<compile_context>
chip_gen: v7x
topology: tpu7x:2x2x1
jax: 0.10.0
libtpu: 0.0.40
codegen_flags: <defaults>
</compile_context>

<pallas_src>
import jax
import jax.numpy as jnp
from jax import lax
from jax.experimental import pallas as pl
from jax.experimental.pallas import tpu as pltpu

LEAK = 0.2
BN_EPS = 1e-5


def _leaky(x):
    return jnp.where(x > 0, x, LEAK * x)


# ------------- Kernel A: fused KNN_dist aggregation + Linear(512,512) -------------
def knn_conv_kernel(idx_ref, w_ref, f_ref, wc_ref, bc_ref,
                    y_ref, ssum_ref, ssq_ref):
    # idx_ref / w_ref: (1, k, R) -- row j holds, for every centre point r of the
    #   block, the block-local index / R-MLP weight of r's j-th neighbour.
    # f_ref: (1, R, C) bf16 ; wc_ref: (C, C) bf16 ; bc_ref: (1, C) f32.
    R = f_ref.shape[1]
    k = idx_ref.shape[1]

    idxs = idx_ref[0]                                   # (k, R) int32, lane-dense
    ws = w_ref[0]                                       # (k, R) f32,  lane-dense

    # Weighted adjacency, built transposed: a_t[s, r] = sum_j w[r,j]*[idx[r,j]==s].
    # Lane-dense rows broadcast along sublanes (cheap); k is small & static, so
    # this is k unrolled VPU compare+select+add passes over an (R, R) tile.
    s_iota = lax.broadcasted_iota(jnp.int32, (R, R), 0)
    a_t = jnp.zeros((R, R), jnp.float32)
    for j in range(k):
        a_t = a_t + jnp.where(idxs[j:j + 1, :] == s_iota, ws[j:j + 1, :], 0.0)

    # Gather + weighting + k-sum fused into ONE bf16 MXU matmul (contract s).
    agg = lax.dot_general(a_t.astype(jnp.bfloat16), f_ref[0],
                          (((0,), (0,)), ((), ())),
                          preferred_element_type=jnp.float32)        # (R, C)

    # Fused LocalGCN.conv[0]: Linear(512, 512), Wc resident in VMEM as bf16.
    y = jnp.dot(agg.astype(jnp.bfloat16), wc_ref[...],
                preferred_element_type=jnp.float32) + bc_ref[...]    # (R, C) f32

    y_ref[0] = y.astype(y_ref.dtype)
    # Per-block partial statistics for the training-mode BatchNorm1d, computed
    # in f32 before the bf16 downcast; finalized in the wrapper.
    ssum_ref[0] = jnp.sum(y, axis=0, keepdims=True)
    ssq_ref[0] = jnp.sum(y * y, axis=0, keepdims=True)


# ------------------ Kernel B: BatchNorm apply + LeakyReLU(0.2) --------------------
def bn_act_kernel(y_ref, scale_ref, shift_ref, o_ref):
    # Pure lane-dense FMA + LeakyReLU stream; scale/shift precomputed in wrapper.
    z = y_ref[0].astype(jnp.float32) * scale_ref[...] + shift_ref[...]
    o_ref[0] = jnp.where(z > 0, z, LEAK * z).astype(o_ref.dtype)


# ----------------------------------- wrapper -----------------------------------
def _pick_batch_tile(B, N):
    """Largest divisor Bt of B such that R = Bt*N stays <= 512 (A is R*R f32,
    F/y blocks are R*512 bf16 -> a few MiB incl. double buffers, comfortably
    under v7x's 64 MiB VMEM) while keeping G = B/Bt >= 2 so the 'parallel'
    grid axis can be split across v7x's two TensorCores."""
    best = 1
    for d in range(1, B + 1):
        if B % d:
            continue
        if d * N > 512:
            continue
        if B > 1 and B // d < 2:
            continue
        best = d
    return best


def local_gcn_forward(F, V, params, *, k, n_views, batch_tile=None):
    B, N, C = F.shape
    assert N == n_views and C == 512
    w1, b1, w2, b2, w3, b3, wc, bc, gamma, beta = params

    Bt = batch_tile if batch_tile is not None else _pick_batch_tile(B, N)
    assert B % Bt == 0, "batch_tile must divide the batch size"
    G = B // Bt
    R = Bt * N          # rows handled per grid step
    M = B * N           # total rows normalized by the BatchNorm

    # ---- glue: k-NN selection ----
    # TODO(synk): torch.topk (k-NN selection) has no clean Pallas TPU
    # equivalent; done with lax.top_k in plain JAX. Tie-breaking for duplicate
    # points may differ from torch.topk; the neighbour sum is order-invariant,
    # but slot 0 ("self") feeds the R-MLP, so degenerate inputs may differ.
    sq = jnp.sum(V * V, axis=-1)
    dist = -2.0 * jnp.einsum('bnc,bmc->bnm', V, V) + sq[:, :, None] + sq[:, None, :]
    # torch: topk(dist, k, dim=1, largest=False)[1].transpose(1, 2) -> [B, N, k]
    _, idx = lax.top_k(-jnp.transpose(dist, (0, 2, 1)), k)
    idx = idx.astype(jnp.int32)                                  # (B, N, k)

    # ---- glue: tiny relative-geometry MLP (KNN_dist.R) in plain JAX ----
    bix = jnp.arange(B, dtype=jnp.int32)[:, None, None]
    vg = V[bix, idx]                                             # (B, N, k, 3)
    v0 = jnp.broadcast_to(vg[:, :, 0:1, :], vg.shape)            # nearest (slot 0)
    diff = v0 - vg
    dnorm = jnp.sqrt(jnp.sum(diff * diff, axis=-1, keepdims=True))
    feat = jnp.concatenate([v0, vg, diff, dnorm], axis=-1)       # (B, N, k, 10)
    h = _leaky(feat @ w1 + b1)
    h = _leaky(h @ w2 + b2)
    w_nbr = (h @ w3 + b3)[..., 0]                                # (B, N, k)

    # ---- block-local, lane-dense kernel inputs ----
    local_off = ((jnp.arange(B, dtype=jnp.int32) % Bt) * N)[:, None, None]
    idx_off = idx + local_off                                    # values in [0, R)
    idx_in = idx_off.reshape(G, Bt, N, k).transpose(0, 3, 1, 2).reshape(G, k, R)
    w_in = w_nbr.astype(jnp.float32).reshape(G, Bt, N, k).transpose(0, 3, 1, 2)
    w_in = w_in.reshape(G, k, R)

    F3 = F.reshape(G, R, C).astype(jnp.bfloat16)                 # halve F DMA

    vmem_limit = 32 * 1024 * 1024

    # ---- Kernel A: fused neighbour aggregation + Linear(512,512) + BN partials ----
    y, ssum, ssq = pl.pallas_call(
        knn_conv_kernel,
        out_shape=(jax.ShapeDtypeStruct((G, R, C), jnp.bfloat16),
                   jax.ShapeDtypeStruct((G, 1, C), jnp.float32),
                   jax.ShapeDtypeStruct((G, 1, C), jnp.float32)),
        grid_spec=pltpu.PrefetchScalarGridSpec(
            num_scalar_prefetch=0,
            grid=(G,),
            in_specs=[
                pl.BlockSpec((1, k, R), lambda g: (g, 0, 0)),     # neighbour indices
                pl.BlockSpec((1, k, R), lambda g: (g, 0, 0)),     # neighbour weights
                pl.BlockSpec((1, R, C), lambda g: (g, 0, 0)),     # F block (bf16)
                pl.BlockSpec((C, C), lambda g: (0, 0)),           # Wc (bf16, resident)
                pl.BlockSpec((1, C), lambda g: (0, 0)),           # bc
            ],
            out_specs=(
                pl.BlockSpec((1, R, C), lambda g: (g, 0, 0)),     # pre-BN activations
                pl.BlockSpec((1, 1, C), lambda g: (g, 0, 0)),     # partial sum
                pl.BlockSpec((1, 1, C), lambda g: (g, 0, 0)),     # partial sum of sq
            ),
        ),
        compiler_params=pltpu.CompilerParams(
            dimension_semantics=("parallel",),
            vmem_limit_bytes=vmem_limit,
        ),
    )(idx_in, w_in, F3, wc.astype(jnp.bfloat16), bc)

    # ---- BatchNorm1d statistics finalize (tiny Gx512 reduction, plain JAX) ----
    # TODO(synk): E[x^2]-E[x]^2 in f32 can cancel for large-mean activations; a
    # shifted two-pass variance would be safer, accepted here.
    tot1 = jnp.sum(ssum, axis=0)                                 # (1, C)
    tot2 = jnp.sum(ssq, axis=0)                                  # (1, C)
    mean = tot1 / M
    var = jnp.maximum(tot2 / M - mean * mean, 0.0)               # biased batch variance
    scale = gamma * lax.rsqrt(var + BN_EPS)
    shift = beta - mean * scale
    # TODO(synk): running_mean/running_var updates of nn.BatchNorm1d are module
    # state, not part of the forward output; not modelled here.

    # ---- Kernel B: y*scale + shift, LeakyReLU ----
    out = pl.pallas_call(
        bn_act_kernel,
        out_shape=jax.ShapeDtypeStruct((G, R, C), F.dtype),
        grid_spec=pltpu.PrefetchScalarGridSpec(
            num_scalar_prefetch=0,
            grid=(G,),
            in_specs=[
                pl.BlockSpec((1, R, C), lambda g: (g, 0, 0)),     # y block (bf16)
                pl.BlockSpec((1, C), lambda g: (0, 0)),           # scale
                pl.BlockSpec((1, C), lambda g: (0, 0)),           # shift
            ],
            out_specs=pl.BlockSpec((1, R, C), lambda g: (g, 0, 0)),
        ),
        compiler_params=pltpu.CompilerParams(
            dimension_semantics=("parallel",),
            vmem_limit_bytes=vmem_limit,
        ),
    )(y, scale, shift)

    return out.reshape(-1, n_views, C)


# ------------------------------ deterministic params ------------------------------
def init_params(key):
    ks = jax.random.split(key, 4)

    def lin(kk, fan_in, fan_out):
        bound = 1.0 / (fan_in ** 0.5)
        kw, kb = jax.random.split(kk)
        w = jax.random.uniform(kw, (fan_in, fan_out), jnp.float32, -bound, bound)
        b = jax.random.uniform(kb, (1, fan_out), jnp.float32, -bound, bound)
        return w, b

    w1, b1 = lin(ks[0], 10, 10)        # KNN_dist.R[0]
    w2, b2 = lin(ks[1], 10, 10)        # KNN_dist.R[2]
    w3, b3 = lin(ks[2], 10, 1)         # KNN_dist.R[4]
    wc, bc = lin(ks[3], 512, 512)      # LocalGCN.conv[0]
    gamma = jnp.ones((1, 512), jnp.float32)   # BatchNorm1d weight
    beta = jnp.zeros((1, 512), jnp.float32)   # BatchNorm1d bias
    return (w1, b1, w2, b2, w3, b3, wc, bc, gamma, beta)


if __name__ == "__main__":
    key = jax.random.PRNGKey(0)
    k_f, k_v, k_p = jax.random.split(key, 3)

    B, n_views, k = 8, 8, 4
    F = jax.random.normal(k_f, (B, n_views, 512), jnp.float32)
    V = jax.random.normal(k_v, (B, n_views, 3), jnp.float32)
    params = init_params(k_p)

    fwd = jax.jit(local_gcn_forward,
                  static_argnames=("k", "n_views", "batch_tile"))
    # batch_tile=4 -> grid of 2 blocks: exercises multi-block tiling and the
    # cross-block BatchNorm statistics path.
    out = fwd(F, V, params, k=k, n_views=n_views, batch_tile=4)
    out = jax.block_until_ready(out)
    assert out.shape == (B, n_views, 512)
    assert bool(jnp.all(jnp.isfinite(out)))
    print("KERNEL_OK")
</pallas_src>

<mosaic_0001>
module attributes {stable_mosaic.version = 11 : i64} {
  func.func @knn_conv_kernel(%arg0: i32, %arg1: memref<1x4x32xi32, #tpu.memory_space<vmem>>, %arg2: memref<1x4x32xf32, #tpu.memory_space<vmem>>, %arg3: memref<1x32x512xbf16, #tpu.memory_space<vmem>>, %arg4: memref<512x512xbf16, #tpu.memory_space<vmem>>, %arg5: memref<1x512xf32, #tpu.memory_space<vmem>>, %arg6: memref<1x32x512xbf16, #tpu.memory_space<vmem>>, %arg7: memref<1x1x512xf32, #tpu.memory_space<vmem>>, %arg8: memref<1x1x512xf32, #tpu.memory_space<vmem>>) attributes {dimension_semantics = [#tpu.dimension_semantics<parallel>], iteration_bounds = array<i64: 2>, scalar_prefetch = 0 : i64, scratch_operands = 0 : i64, tpu.core_type = #tpu.core_type<tc>, window_params = [{transform_indices = @transform_0, window_bounds = array<i64: 1, 4, 32>}, {transform_indices = @transform_1, window_bounds = array<i64: 1, 4, 32>}, {transform_indices = @transform_2, window_bounds = array<i64: 1, 32, 512>}, {pipeline_mode = #tpu.pipeline_mode<synchronous>, transform_indices = @transform_3, window_bounds = array<i64: 512, 512>}, {pipeline_mode = #tpu.pipeline_mode<synchronous>, transform_indices = @transform_4, window_bounds = array<i64: 1, 512>}, {transform_indices = @transform_5, window_bounds = array<i64: 1, 32, 512>}, {transform_indices = @transform_6, window_bounds = array<i64: 1, 1, 512>}, {transform_indices = @transform_7, window_bounds = array<i64: 1, 1, 512>}]} {
    %c0 = arith.constant 0 : index
    %c0_0 = arith.constant 0 : index
    %c0_1 = arith.constant 0 : index
    %0 = vector.load %arg1[%c0, %c0_0, %c0_1] : memref<1x4x32xi32, #tpu.memory_space<vmem>>, vector<1x4x32xi32>
    %1 = vector.shape_cast %0 : vector<1x4x32xi32> to vector<4x32xi32>
    %c0_2 = arith.constant 0 : index
    %c0_3 = arith.constant 0 : index
    %c0_4 = arith.constant 0 : index
    %2 = vector.load %arg2[%c0_2, %c0_3, %c0_4] : memref<1x4x32xf32, #tpu.memory_space<vmem>>, vector<1x4x32xf32>
    %3 = vector.shape_cast %2 : vector<1x4x32xf32> to vector<4x32xf32>
    %4 = tpu.iota {dimensions = array<i32: 0>} : vector<32x32xi32>
    %cst = arith.constant 0.000000e+00 : f32
    %5 = vector.broadcast %cst : f32 to vector<32x32xf32>
    %6 = vector.extract_strided_slice %1 {offsets = [0, 0], sizes = [1, 32], strides = [1, 1]} : vector<4x32xi32> to vector<1x32xi32>
    %7 = vector.broadcast %6 : vector<1x32xi32> to vector<32x32xi32>
    %8 = arith.cmpi eq, %7, %4 : vector<32x32xi32>
    %9 = vector.extract_strided_slice %3 {offsets = [0, 0], sizes = [1, 32], strides = [1, 1]} : vector<4x32xf32> to vector<1x32xf32>
    %cst_5 = arith.constant 0.000000e+00 : f32
    %10 = vector.shape_cast %9 : vector<1x32xf32> to vector<1x32xf32>
    %11 = vector.broadcast %10 : vector<1x32xf32> to vector<32x32xf32>
    %12 = vector.broadcast %cst_5 : f32 to vector<32x32xf32>
    %13 = arith.select %8, %11, %12 : vector<32x32xi1>, vector<32x32xf32>
    %14 = arith.addf %5, %13 : vector<32x32xf32>
    %15 = vector.extract_strided_slice %1 {offsets = [1, 0], sizes = [1, 32], strides = [1, 1]} : vector<4x32xi32> to vector<1x32xi32>
    %16 = vector.broadcast %15 : vector<1x32xi32> to vector<32x32xi32>
    %17 = arith.cmpi eq, %16, %4 : vector<32x32xi32>
    %18 = vector.extract_strided_slice %3 {offsets = [1, 0], sizes = [1, 32], strides = [1, 1]} : vector<4x32xf32> to vector<1x32xf32>
    %cst_6 = arith.constant 0.000000e+00 : f32
    %19 = vector.shape_cast %18 : vector<1x32xf32> to vector<1x32xf32>
    %20 = vector.broadcast %19 : vector<1x32xf32> to vector<32x32xf32>
    %21 = vector.broadcast %cst_6 : f32 to vector<32x32xf32>
    %22 = arith.select %17, %20, %21 : vector<32x32xi1>, vector<32x32xf32>
    %23 = arith.addf %14, %22 : vector<32x32xf32>
    %24 = vector.extract_strided_slice %1 {offsets = [2, 0], sizes = [1, 32], strides = [1, 1]} : vector<4x32xi32> to vector<1x32xi32>
    %25 = vector.broadcast %24 : vector<1x32xi32> to vector<32x32xi32>
    %26 = arith.cmpi eq, %25, %4 : vector<32x32xi32>
    %27 = vector.extract_strided_slice %3 {offsets = [2, 0], sizes = [1, 32], strides = [1, 1]} : vector<4x32xf32> to vector<1x32xf32>
    %cst_7 = arith.constant 0.000000e+00 : f32
    %28 = vector.shape_cast %27 : vector<1x32xf32> to vector<1x32xf32>
    %29 = vector.broadcast %28 : vector<1x32xf32> to vector<32x32xf32>
    %30 = vector.broadcast %cst_7 : f32 to vector<32x32xf32>
    %31 = arith.select %26, %29, %30 : vector<32x32xi1>, vector<32x32xf32>
    %32 = arith.addf %23, %31 : vector<32x32xf32>
    %33 = vector.extract_strided_slice %1 {offsets = [3, 0], sizes = [1, 32], strides = [1, 1]} : vector<4x32xi32> to vector<1x32xi32>
    %34 = vector.broadcast %33 : vector<1x32xi32> to vector<32x32xi32>
    %35 = arith.cmpi eq, %34, %4 : vector<32x32xi32>
    %36 = vector.extract_strided_slice %3 {offsets = [3, 0], sizes = [1, 32], strides = [1, 1]} : vector<4x32xf32> to vector<1x32xf32>
    %cst_8 = arith.constant 0.000000e+00 : f32
    %37 = vector.shape_cast %36 : vector<1x32xf32> to vector<1x32xf32>
    %38 = vector.broadcast %37 : vector<1x32xf32> to vector<32x32xf32>
    %39 = vector.broadcast %cst_8 : f32 to vector<32x32xf32>
    %40 = arith.select %35, %38, %39 : vector<32x32xi1>, vector<32x32xf32>
    %41 = arith.addf %32, %40 : vector<32x32xf32>
    %42 = arith.truncf %41 : vector<32x32xf32> to vector<32x32xbf16>
    %c0_9 = arith.constant 0 : index
    %c0_10 = arith.constant 0 : index
    %c0_11 = arith.constant 0 : index
    %43 = vector.load %arg3[%c0_9, %c0_10, %c0_11] : memref<1x32x512xbf16, #tpu.memory_space<vmem>>, vector<1x32x512xbf16>
    %44 = vector.shape_cast %43 : vector<1x32x512xbf16> to vector<32x512xbf16>
    %cst_12 = arith.constant dense<0.000000e+00> : vector<32x512xf32>
    %45 = tpu.matmul %42, %44, %cst_12 {dimension_numbers = #tpu.dot_dimension_numbers<[0], [0], [1], [1], [0, 1, 1, 1], [], []>} : vector<32x32xbf16>, vector<32x512xbf16>, vector<32x512xf32> -> vector<32x512xf32>
    %46 = arith.truncf %45 : vector<32x512xf32> to vector<32x512xbf16>
    %c0_13 = arith.constant 0 : index
    %c0_14 = arith.constant 0 : index
    %47 = vector.load %arg4[%c0_13, %c0_14] : memref<512x512xbf16, #tpu.memory_space<vmem>>, vector<512x512xbf16>
    %cst_15 = arith.constant dense<0.000000e+00> : vector<32x512xf32>
    %48 = tpu.matmul %46, %47, %cst_15 {dimension_numbers = #tpu.dot_dimension_numbers<[1], [0], [0], [1], [0, 0, 1, 1], [], []>} : vector<32x512xbf16>, vector<512x512xbf16>, vector<32x512xf32> -> vector<32x512xf32>
    %c0_16 = arith.constant 0 : index
    %c0_17 = arith.constant 0 : index
    %49 = vector.load %arg5[%c0_16, %c0_17] : memref<1x512xf32, #tpu.memory_space<vmem>>, vector<1x512xf32>
    %50 = vector.broadcast %49 : vector<1x512xf32> to vector<32x512xf32>
    %51 = arith.addf %48, %50 : vector<32x512xf32>
    %52 = arith.truncf %51 : vector<32x512xf32> to vector<32x512xbf16>
    %c0_18 = arith.constant 0 : index
    %c0_19 = arith.constant 0 : index
    %c0_20 = arith.constant 0 : index
    %53 = vector.load %arg6[%c0_18, %c0_19, %c0_20] : memref<1x32x512xbf16, #tpu.memory_space<vmem>>, vector<1x32x512xbf16>
    %54 = vector.shape_cast %53 : vector<1x32x512xbf16> to vector<32x512xbf16>
    %55 = vector.shape_cast %52 : vector<32x512xbf16> to vector<1x32x512xbf16>
    tpu.vector_store %arg6[%c0_18, %c0_19, %c0_20], %55 {strides = array<i32>} : memref<1x32x512xbf16, #tpu.memory_space<vmem>>, vector<1x32x512xbf16>,
    %cst_21 = arith.constant dense<0.000000e+00> : vector<512xf32>
    %56 = vector.multi_reduction <add>, %51, %cst_21 [0] : vector<32x512xf32> to vector<512xf32>
    %57 = vector.shape_cast %56 : vector<512xf32> to vector<1x512xf32>
    %c0_22 = arith.constant 0 : index
    %c0_23 = arith.constant 0 : index
    %c0_24 = arith.constant 0 : index
    %58 = vector.load %arg7[%c0_22, %c0_23, %c0_24] : memref<1x1x512xf32, #tpu.memory_space<vmem>>, vector<1x1x512xf32>
    %59 = vector.shape_cast %58 : vector<1x1x512xf32> to vector<1x512xf32>
    %60 = vector.shape_cast %57 : vector<1x512xf32> to vector<1x1x512xf32>
    tpu.vector_store %arg7[%c0_22, %c0_23, %c0_24], %60 {strides = array<i32>} : memref<1x1x512xf32, #tpu.memory_space<vmem>>, vector<1x1x512xf32>,
    %61 = arith.mulf %51, %51 : vector<32x512xf32>
    %cst_25 = arith.constant dense<0.000000e+00> : vector<512xf32>
    %62 = vector.multi_reduction <add>, %61, %cst_25 [0] : vector<32x512xf32> to vector<512xf32>
    %63 = vector.shape_cast %62 : vector<512xf32> to vector<1x512xf32>
    %c0_26 = arith.constant 0 : index
    %c0_27 = arith.constant 0 : index
    %c0_28 = arith.constant 0 : index
    %64 = vector.load %arg8[%c0_26, %c0_27, %c0_28] : memref<1x1x512xf32, #tpu.memory_space<vmem>>, vector<1x1x512xf32>
    %65 = vector.shape_cast %64 : vector<1x1x512xf32> to vector<1x512xf32>
    %66 = vector.shape_cast %63 : vector<1x512xf32> to vector<1x1x512xf32>
    tpu.vector_store %arg8[%c0_26, %c0_27, %c0_28], %66 {strides = array<i32>} : memref<1x1x512xf32, #tpu.memory_space<vmem>>, vector<1x1x512xf32>,
    return
  }
  func.func @transform_0(%arg0: i32) -> (i32, i32, i32) {
    %c0_i32 = arith.constant 0 : i32
    %c0_i32_0 = arith.constant 0 : i32
    %c0_i32_1 = arith.constant 0 : i32
    return %arg0, %c0_i32, %c0_i32_0 : i32, i32, i32
  }
  func.func @transform_1(%arg0: i32) -> (i32, i32, i32) {
    %c0_i32 = arith.constant 0 : i32
    %c0_i32_0 = arith.constant 0 : i32
    %c0_i32_1 = arith.constant 0 : i32
    return %arg0, %c0_i32, %c0_i32_0 : i32, i32, i32
  }
  func.func @transform_2(%arg0: i32) -> (i32, i32, i32) {
    %c0_i32 = arith.constant 0 : i32
    %c0_i32_0 = arith.constant 0 : i32
    %c0_i32_1 = arith.constant 0 : i32
    return %arg0, %c0_i32, %c0_i32_0 : i32, i32, i32
  }
  func.func @transform_3(%arg0: i32) -> (i32, i32) {
    %c0_i32 = arith.constant 0 : i32
    %c0_i32_0 = arith.constant 0 : i32
    %c0_i32_1 = arith.constant 0 : i32
    return %c0_i32, %c0_i32_0 : i32, i32
  }
  func.func @transform_4(%arg0: i32) -> (i32, i32) {
    %c0_i32 = arith.constant 0 : i32
    %c0_i32_0 = arith.constant 0 : i32
    %c0_i32_1 = arith.constant 0 : i32
    return %c0_i32, %c0_i32_0 : i32, i32
  }
  func.func @transform_5(%arg0: i32) -> (i32, i32, i32) {
    %c0_i32 = arith.constant 0 : i32
    %c0_i32_0 = arith.constant 0 : i32
    %c0_i32_1 = arith.constant 0 : i32
    return %arg0, %c0_i32, %c0_i32_0 : i32, i32, i32
  }
  func.func @transform_6(%arg0: i32) -> (i32, i32, i32) {
    %c0_i32 = arith.constant 0 : i32
    %c0_i32_0 = arith.constant 0 : i32
    %c0_i32_1 = arith.constant 0 : i32
    return %arg0, %c0_i32, %c0_i32_0 : i32, i32, i32
  }
  func.func @transform_7(%arg0: i32) -> (i32, i32, i32) {
    %c0_i32 = arith.constant 0 : i32
    %c0_i32_0 = arith.constant 0 : i32
    %c0_i32_1 = arith.constant 0 : i32
    return %arg0, %c0_i32, %c0_i32_0 : i32, i32, i32
  }
}

module attributes {stable_mosaic.version = 11 : i64} {
  func.func @bn_act_kernel(%arg0: i32, %arg1: memref<1x32x512xbf16, #tpu.memory_space<vmem>>, %arg2: memref<1x512xf32, #tpu.memory_space<vmem>>, %arg3: memref<1x512xf32, #tpu.memory_space<vmem>>, %arg4: memref<1x32x512xf32, #tpu.memory_space<vmem>>) attributes {dimension_semantics = [#tpu.dimension_semantics<parallel>], iteration_bounds = array<i64: 2>, scalar_prefetch = 0 : i64, scratch_operands = 0 : i64, tpu.core_type = #tpu.core_type<tc>, window_params = [{transform_indices = @transform_0, window_bounds = array<i64: 1, 32, 512>}, {pipeline_mode = #tpu.pipeline_mode<synchronous>, transform_indices = @transform_1, window_bounds = array<i64: 1, 512>}, {pipeline_mode = #tpu.pipeline_mode<synchronous>, transform_indices = @transform_2, window_bounds = array<i64: 1, 512>}, {transform_indices = @transform_3, window_bounds = array<i64: 1, 32, 512>}]} {
    %c0 = arith.constant 0 : index
    %c0_0 = arith.constant 0 : index
    %c0_1 = arith.constant 0 : index
    %0 = vector.load %arg1[%c0, %c0_0, %c0_1] : memref<1x32x512xbf16, #tpu.memory_space<vmem>>, vector<1x32x512xbf16>
    %1 = vector.shape_cast %0 : vector<1x32x512xbf16> to vector<32x512xbf16>
    %2 = arith.extf %1 : vector<32x512xbf16> to vector<32x512xf32>
    %c0_2 = arith.constant 0 : index
    %c0_3 = arith.constant 0 : index
    %3 = vector.load %arg2[%c0_2, %c0_3] : memref<1x512xf32, #tpu.memory_space<vmem>>, vector<1x512xf32>
    %4 = vector.broadcast %3 : vector<1x512xf32> to vector<32x512xf32>
    %5 = arith.mulf %2, %4 : vector<32x512xf32>
    %c0_4 = arith.constant 0 : index
    %c0_5 = arith.constant 0 : index
    %6 = vector.load %arg3[%c0_4, %c0_5] : memref<1x512xf32, #tpu.memory_space<vmem>>, vector<1x512xf32>
    %7 = vector.broadcast %6 : vector<1x512xf32> to vector<32x512xf32>
    %8 = arith.addf %5, %7 : vector<32x512xf32>
    %cst = arith.constant 0.000000e+00 : f32
    %9 = vector.broadcast %cst : f32 to vector<32x512xf32>
    %10 = arith.cmpf ogt, %8, %9 : vector<32x512xf32>
    %cst_6 = arith.constant 2.000000e-01 : f32
    %11 = vector.broadcast %cst_6 : f32 to vector<32x512xf32>
    %12 = arith.mulf %11, %8 : vector<32x512xf32>
    %13 = arith.select %10, %8, %12 : vector<32x512xi1>, vector<32x512xf32>
    %c0_7 = arith.constant 0 : index
    %c0_8 = arith.constant 0 : index
    %c0_9 = arith.constant 0 : index
    %14 = vector.load %arg4[%c0_7, %c0_8, %c0_9] : memref<1x32x512xf32, #tpu.memory_space<vmem>>, vector<1x32x512xf32>
    %15 = vector.shape_cast %14 : vector<1x32x512xf32> to vector<32x512xf32>
    %16 = vector.shape_cast %13 : vector<32x512xf32> to vector<1x32x512xf32>
    tpu.vector_store %arg4[%c0_7, %c0_8, %c0_9], %16 {strides = array<i32>} : memref<1x32x512xf32, #tpu.memory_space<vmem>>, vector<1x32x512xf32>,
    return
  }
  func.func @transform_0(%arg0: i32) -> (i32, i32, i32) {
    %c0_i32 = arith.constant 0 : i32
    %c0_i32_0 = arith.constant 0 : i32
    %c0_i32_1 = arith.constant 0 : i32
    return %arg0, %c0_i32, %c0_i32_0 : i32, i32, i32
  }
  func.func @transform_1(%arg0: i32) -> (i32, i32) {
    %c0_i32 = arith.constant 0 : i32
    %c0_i32_0 = arith.constant 0 : i32
    %c0_i32_1 = arith.constant 0 : i32
    return %c0_i32, %c0_i32_0 : i32, i32
  }
  func.func @transform_2(%arg0: i32) -> (i32, i32) {
    %c0_i32 = arith.constant 0 : i32
    %c0_i32_0 = arith.constant 0 : i32
    %c0_i32_1 = arith.constant 0 : i32
    return %c0_i32, %c0_i32_0 : i32, i32
  }
  func.func @transform_3(%arg0: i32) -> (i32, i32, i32) {
    %c0_i32 = arith.constant 0 : i32
    %c0_i32_0 = arith.constant 0 : i32
    %c0_i32_1 = arith.constant 0 : i32
    return %arg0, %c0_i32, %c0_i32_0 : i32, i32, i32
  }
}

</mosaic_0001>

<llo_original>
// kernel: local_gcn_forward.3
$region0: #{local_gcn_forward.3}
  #allocation0 [shape = 'u32[]', space=smem, size = 0x4, offset = 0x4, fixed_abs, tag = 'smem constant byte address 0x4 - core index']
  #allocation1 [shape = 'u32[144,128]{1,0:T(1,128)}', space=vmem, size = 0x12000, scoped, tag = 'internal scratch']
  %s0 = inlined_call_operand.vmem [shape: bf16[2,32,512], index: 0, kind: input, shape index: {}]
  %s1 = inlined_call_operand.vmem [shape: f32[1,512], index: 1, kind: input, shape index: {}]
  %s2 = inlined_call_operand.vmem [shape: f32[1,512], index: 2, kind: input, shape index: {}]
  %s3 = inlined_call_operand.hbm [shape: f32[2,32,512], index: 3, kind: output, shape index: {}]
  %s4 = sld [smem:[#allocation0]]
  $region45: #{local_gcn_forward.3} parent=0
    _
  %s6 = ssub.s32 1, %s4
  %s7 = scalar_select 0, %s6, %s4
  $region1: #{local_gcn_forward.3} parent=0
    #allocation2 [shape = 'u8[131072]{0}', space=vmem, size = 0x20000, scoped, tag = 'output window, operand 0']
    #allocation3 [shape = 's32[2]{0}', space=sflag, size = 0x8, scoped, tag = 'scoped memory for local_gcn_forward.3']
    %8 = vsyncpa [#allocation3], 0
    %s9 = scalar_lea.sflag [#allocation3], 1
    %10 = vsyncpa %s9, 0
    loop: start=0, step=1, limit=4
    $region2: #{local_gcn_forward.3} parent=1 // loop_pre_header
      _
    $region3: #{local_gcn_forward.3} parent=1 // loop_header
      %s12 = sphi 0, %s16
      %p13 = scmp.ge.s32.totalorder %s12, 4
      %s22 = sphi 0, %s24
      %s25 = sphi 0, %s22
      %s26 = sphi 0, %s25
      %s42 = sphi 0, %s26
      %s46 = sphi 0, %s46
      %s48 = sphi 0, %s46
      %s49 = sphi 0, %s48
      %s63 = sphi 0, %s49
      %s67 = sphi 0, %s67
      %s69 = sphi 0, %s67
      %s70 = sphi 0, %s69
      %s84 = sphi 0, %s70
      %s90 = sphi 0, %s92
      %s93 = sphi 0, %s90
      %s94 = sphi 0, %s93
      %s110 = sphi 0, %s94
    $region4: #{local_gcn_forward.3} parent=1 // loop_header_branch
      %15 = sbr.rel (%p13) target = $region8
    $region5: #{local_gcn_forward.3} parent=1 // loop_body
      %s17 = ssub.s32 %s12, 1
      %s18 = ssub.s32 %s12, 2
      %s19 = sadd.s32 %s12, 1
      %s20 = ssub.s32 %s12, %s19
      %p21 = scmp.eq.s32.totalorder %s20, 0
      %s23 = sadd.s32 %s22, 1
      %s24 = scalar_select %p21, %s22, %s23
      %p27 = pneg %p21
      %p28 = scmp.eq.s32.totalorder %s12, 1
      %p29 = por %p27, %p28
      %p30 = scmp.ne.s32.totalorder %s22, %s25
      %p31 = scmp.eq.s32.totalorder %s12, 0
      %p32 = por %p30, %p31
      %p33 = scmp.ne.s32.totalorder %s22, %s25
      %p34 = scmp.eq.s32.totalorder %s17, 1
      %p35 = por %p33, %p34
      %p36 = scmp.ne.s32.totalorder %s25, %s26
      %p37 = scmp.eq.s32.totalorder %s17, 0
      %p38 = por %p36, %p37
      %p39 = scmp.ne.s32.totalorder %s25, %s26
      %p40 = scmp.eq.s32.totalorder %s18, 1
      %p41 = por %p39, %p40
      %p43 = scmp.ne.s32.totalorder %s26, %s42
      %p44 = scmp.eq.s32.totalorder %s18, 0
      %p45 = por %p43, %p44
      %s47 = sadd.s32 %s46, 1
      %p50 = scmp.eq.s32.totalorder %s12, 1
      %p51 = scmp.ne.s32.totalorder %s46, %s48
      %p52 = scmp.eq.s32.totalorder %s12, 0
      %p53 = por %p51, %p52
      %p54 = scmp.ne.s32.totalorder %s46, %s48
      %p55 = scmp.eq.s32.totalorder %s17, 1
      %p56 = por %p54, %p55
      %p57 = scmp.ne.s32.totalorder %s48, %s49
      %p58 = scmp.eq.s32.totalorder %s17, 0
      %p59 = por %p57, %p58
      %p60 = scmp.ne.s32.totalorder %s48, %s49
      %p61 = scmp.eq.s32.totalorder %s18, 1
      %p62 = por %p60, %p61
      %p64 = scmp.ne.s32.totalorder %s49, %s63
      %p65 = scmp.eq.s32.totalorder %s18, 0
      %p66 = por %p64, %p65
      %s68 = sadd.s32 %s67, 1
      %p71 = scmp.eq.s32.totalorder %s12, 1
      %p72 = scmp.ne.s32.totalorder %s67, %s69
      %p73 = scmp.eq.s32.totalorder %s12, 0
      %p74 = por %p72, %p73
      %p75 = scmp.ne.s32.totalorder %s67, %s69
      %p76 = scmp.eq.s32.totalorder %s17, 1
      %p77 = por %p75, %p76
      %p78 = scmp.ne.s32.totalorder %s69, %s70
      %p79 = scmp.eq.s32.totalorder %s17, 0
      %p80 = por %p78, %p79
      %p81 = scmp.ne.s32.totalorder %s69, %s70
      %p82 = scmp.eq.s32.totalorder %s18, 1
      %p83 = por %p81, %p82
      %p85 = scmp.ne.s32.totalorder %s70, %s84
      %p86 = scmp.eq.s32.totalorder %s18, 0
      %p87 = por %p85, %p86
      %s88 = ssub.s32 %s12, %s19
      %p89 = scmp.eq.s32.totalorder %s88, 0
      %s91 = sadd.s32 %s90, 1
      %s92 = scalar_select %p89, %s90, %s91
      %p95 = pneg %p89
      %p96 = scmp.eq.s32.totalorder %s12, 1
      %p97 = por %p95, %p96
      %p98 = scmp.ne.s32.totalorder %s90, %s93
      %p99 = scmp.eq.s32.totalorder %s12, 0
      %p100 = por %p98, %p99
      %p101 = scmp.ne.s32.totalorder %s90, %s93
      %p102 = scmp.eq.s32.totalorder %s17, 1
      %p103 = por %p101, %p102
      %p104 = scmp.ne.s32.totalorder %s93, %s94
      %p105 = scmp.eq.s32.totalorder %s17, 0
      %p106 = por %p104, %p105
      %p107 = scmp.ne.s32.totalorder %s93, %s94
      %p108 = scmp.eq.s32.totalorder %s18, 1
      %p109 = por %p107, %p108
      %p111 = scmp.ne.s32.totalorder %s94, %s110
      %p112 = scmp.eq.s32.totalorder %s18, 0
      %p113 = por %p111, %p112
      %p114 = scmp.le.s32.totalorder 1, %s12
      %p115 = scmp.lt.s32.totalorder %s12, 3
      %p116 = pnand %p114, %p115
      %p117 = pneg %p116
      // Predicated region
      $region9: #{local_gcn_forward.3} parent=5 // pred_check
        _
      $region10: #{local_gcn_forward.3} parent=5 // pred_check_branch
        %119 = sbr.rel (%p116) target = $region12
      $region11: #{local_gcn_forward.3} parent=5 // pred_region
        %s120 = ssub.s32 %s12, 1
        // Predicated region
        $region13: #{local_gcn_forward.3} parent=11 // pred_check
          %p121 = pneg %p59
        $region14: #{local_gcn_forward.3} parent=11 // pred_check_branch
          %123 = sbr.rel (%p121) target = $region16
        $region15: #{local_gcn_forward.3} parent=11 // pred_region
          _
        $region16: #{local_gcn_forward.3} parent=11 // pred_fallthru
          _
        // Predicated region
        $region17: #{local_gcn_forward.3} parent=11 // pred_check
          %p124 = pneg %p80
        $region18: #{local_gcn_forward.3} parent=11 // pred_check_branch
          %126 = sbr.rel (%p124) target = $region20
        $region19: #{local_gcn_forward.3} parent=11 // pred_region
          _
        $region20: #{local_gcn_forward.3} parent=11 // pred_fallthru
          _
      $region12: #{local_gcn_forward.3} parent=5 // pred_fallthru
        _
      %p127 = scmp.lt.s32.totalorder %s12, 2
      // Predicated region
      $region21: #{local_gcn_forward.3} parent=5 // pred_check
        %p128 = pneg %p127
      $region22: #{local_gcn_forward.3} parent=5 // pred_check_branch
        %130 = sbr.rel (%p128) target = $region24
      $region23: #{local_gcn_forward.3} parent=5 // pred_region
        // Predicated region
        $region25: #{local_gcn_forward.3} parent=23 // pred_check
          %p131 = pneg %p32
        $region26: #{local_gcn_forward.3} parent=23 // pred_check_branch
          %133 = sbr.rel (%p131) target = $region28
        $region27: #{local_gcn_forward.3} parent=23 // pred_region
          %p134 = scmp.lt.s32.totalorder %s12, 1
          %s135 = scalar_select %p134, %s12, 1
          %s136 = smul.addr %s135, 16
          %s137 = smul.addr %s136, 4
          %s138 = scalar_lea.vmem %s0, %s137
        $region28: #{local_gcn_forward.3} parent=23 // pred_fallthru
          _
      $region24: #{local_gcn_forward.3} parent=5 // pred_fallthru
        _
      %p139 = scmp.le.s32.totalorder 1, %s12
      %p140 = scmp.lt.s32.totalorder %s12, 3
      %p141 = pnand %p139, %p140
      %p142 = pneg %p141
      // Predicated region
      $region29: #{local_gcn_forward.3} parent=5 // pred_check
        _
      $region30: #{local_gcn_forward.3} parent=5 // pred_check_branch
        %144 = sbr.rel (%p141) target = $region32
      $region31: #{local_gcn_forward.3} parent=5 // pred_region
        %s145 = ssub.s32 %s12, 1
        %p146 = scmp.lt.s32.totalorder %s17, 1
        %s147 = scalar_select %p146, %s17, 1
        %s148 = smul.addr %s147, 16
        %s149 = smul.addr %s148, 4
        %s150 = scalar_lea.vmem %s0, %s149
        %p151 = pneg %p38
        %p152 = pneg %p35
        %p153 = pneg %p59
        %p154 = pneg %p56
        %p155 = pneg %p80
        %p156 = pneg %p77
        %p157 = pneg %p106
        %p158 = pneg %p103
        %s159 = sand.u32 %s93, 1
        %s160 = scalar_lea.sflag [#allocation3], %s159
        %s161 = sand.u32 %s93, 1
        %s162 = smul.addr %s161, 128
        %s163 = scalar_lea.vmem [#allocation2], %s162
        %p164 = scmp.lt.s32.totalorder %s17, 1
        %s165 = scalar_select %p164, %s17, 1
        %s166 = smul.addr %s165, 16
        %s167 = smul.addr %s166, 4
        %s168 = scalar_lea.vmem %s0, %s167
        %v169 = vld [vmem:[%s168] sm:$0xff]
        %v170 = vld [vmem:[%s168 + $0x8] sm:$0xff]
        %v171 = vld [vmem:[%s168 + $0x10] sm:$0xff]
        %v172 = vld [vmem:[%s168 + $0x18] sm:$0xff]
        %v173 = vld [vmem:[%s168 + $0x20] sm:$0xff]
        %v174 = vld [vmem:[%s168 + $0x28] sm:$0xff]
        %v175 = vld [vmem:[%s168 + $0x30] sm:$0xff]
        %v176 = vld [vmem:[%s168 + $0x38] sm:$0xff]
        %v177 = vunpack.c.l.bf16 %v169
        %v178 = vunpack.c.h.bf16 %v169
        %v179 = vunpack.c.l.bf16 %v170
        %v180 = vunpack.c.h.bf16 %v170
        %v181 = vunpack.c.l.bf16 %v171
        %v182 = vunpack.c.h.bf16 %v171
        %v183 = vunpack.c.l.bf16 %v172
        %v184 = vunpack.c.h.bf16 %v172
        %v185 = vunpack.c.l.bf16 %v173
        %v186 = vunpack.c.h.bf16 %v173
        %v187 = vunpack.c.l.bf16 %v174
        %v188 = vunpack.c.h.bf16 %v174
        %v189 = vunpack.c.l.bf16 %v175
        %v190 = vunpack.c.h.bf16 %v175
        %v191 = vunpack.c.l.bf16 %v176
        %v192 = vunpack.c.h.bf16 %v176
        %v193 = vld [vmem:[%s1] sm:$0xf]
        %v195 = vlaneseq
        %v196 = vshrl.u32 %v195, 7
        %v197 = vsub.s32 0, %v196
        %v198 = vrot.slane %v193, %v197
        %v199 = vlaneseq
        %v200 = vshrl.u32 %v199, 7
        %v201 = vsub.s32 1, %v200
        %v202 = vrot.slane %v193, %v201
        %v203 = vlaneseq
        %v204 = vshrl.u32 %v203, 7
        %v205 = vsub.s32 2, %v204
        %v206 = vrot.slane %v193, %v205
        %v207 = vlaneseq
        %v208 = vshrl.u32 %v207, 7
        %v209 = vsub.s32 3, %v208
        %v210 = vrot.slane %v193, %v209
        %v215 = vmul.f32 %v177, %v198
        %v216 = vmul.f32 %v178, %v202
        %v217 = vmul.f32 %v179, %v206
        %v218 = vmul.f32 %v180, %v210
        %v219 = vmul.f32 %v181, %v198
        %v220 = vmul.f32 %v182, %v202
        %v221 = vmul.f32 %v183, %v206
        %v222 = vmul.f32 %v184, %v210
        %v223 = vmul.f32 %v185, %v198
        %v224 = vmul.f32 %v186, %v202
        %v225 = vmul.f32 %v187, %v206
        %v226 = vmul.f32 %v188, %v210
        %v227 = vmul.f32 %v189, %v198
        %v228 = vmul.f32 %v190, %v202
        %v229 = vmul.f32 %v191, %v206
        %v230 = vmul.f32 %v192, %v210
        %v231 = vld [vmem:[%s2] sm:$0xf]
        %v233 = vlaneseq
        %v234 = vshrl.u32 %v233, 7
        %v235 = vsub.s32 0, %v234
        %v236 = vrot.slane %v231, %v235
        %v237 = vlaneseq
        %v238 = vshrl.u32 %v237, 7
        %v239 = vsub.s32 1, %v238
        %v240 = vrot.slane %v231, %v239
        %v241 = vlaneseq
        %v242 = vshrl.u32 %v241, 7
        %v243 = vsub.s32 2, %v242
        %v244 = vrot.slane %v231, %v243
        %v245 = vlaneseq
        %v246 = vshrl.u32 %v245, 7
        %v247 = vsub.s32 3, %v246
        %v248 = vrot.slane %v231, %v247
        %v253 = vadd.f32 %v215, %v236
        %v254 = vadd.f32 %v216, %v240
        %v255 = vadd.f32 %v217, %v244
        %v256 = vadd.f32 %v218, %v248
        %v257 = vadd.f32 %v219, %v236
        %v258 = vadd.f32 %v220, %v240
        %v259 = vadd.f32 %v221, %v244
        %v260 = vadd.f32 %v222, %v248
        %v261 = vadd.f32 %v223, %v236
        %v262 = vadd.f32 %v224, %v240
        %v263 = vadd.f32 %v225, %v244
        %v264 = vadd.f32 %v226, %v248
        %v265 = vadd.f32 %v227, %v236
        %v266 = vadd.f32 %v228, %v240
        %v267 = vadd.f32 %v229, %v244
        %v268 = vadd.f32 %v230, %v248
        %vm269 = vcmp.gt.f32.partialorder %v253, 0.0
        %vm270 = vcmp.gt.f32.partialorder %v254, 0.0
        %vm271 = vcmp.gt.f32.partialorder %v255, 0.0
        %vm272 = vcmp.gt.f32.partialorder %v256, 0.0
        %vm273 = vcmp.gt.f32.partialorder %v257, 0.0
        %vm274 = vcmp.gt.f32.partialorder %v258, 0.0
        %vm275 = vcmp.gt.f32.partialorder %v259, 0.0
        %vm276 = vcmp.gt.f32.partialorder %v260, 0.0
        %vm277 = vcmp.gt.f32.partialorder %v261, 0.0
        %vm278 = vcmp.gt.f32.partialorder %v262, 0.0
        %vm279 = vcmp.gt.f32.partialorder %v263, 0.0
        %vm280 = vcmp.gt.f32.partialorder %v264, 0.0
        %vm281 = vcmp.gt.f32.partialorder %v265, 0.0
        %vm282 = vcmp.gt.f32.partialorder %v266, 0.0
        %vm283 = vcmp.gt.f32.partialorder %v267, 0.0
        %vm284 = vcmp.gt.f32.partialorder %v268, 0.0
        %v285 = vmul.f32 %v253, 0.2
        %v286 = vmul.f32 %v254, 0.2
        %v287 = vmul.f32 %v255, 0.2
        %v288 = vmul.f32 %v256, 0.2
        %v289 = vmul.f32 %v257, 0.2
        %v290 = vmul.f32 %v258, 0.2
        %v291 = vmul.f32 %v259, 0.2
        %v292 = vmul.f32 %v260, 0.2
        %v293 = vmul.f32 %v261, 0.2
        %v294 = vmul.f32 %v262, 0.2
        %v295 = vmul.f32 %v263, 0.2
        %v296 = vmul.f32 %v264, 0.2
        %v297 = vmul.f32 %v265, 0.2
        %v298 = vmul.f32 %v266, 0.2
        %v299 = vmul.f32 %v267, 0.2
        %v300 = vmul.f32 %v268, 0.2
        %v301 = vsel %vm269, %v253, %v285
        %v302 = vsel %vm270, %v254, %v286
        %v303 = vsel %vm271, %v255, %v287
        %v304 = vsel %vm272, %v256, %v288
        %v305 = vsel %vm273, %v257, %v289
        %v306 = vsel %vm274, %v258, %v290
        %v307 = vsel %vm275, %v259, %v291
        %v308 = vsel %vm276, %v260, %v292
        %v309 = vsel %vm277, %v261, %v293
        %v310 = vsel %vm278, %v262, %v294
        %v311 = vsel %vm279, %v263, %v295
        %v312 = vsel %vm280, %v264, %v296
        %v313 = vsel %vm281, %v265, %v297
        %v314 = vsel %vm282, %v266, %v298
        %v315 = vsel %vm283, %v267, %v299
        %v316 = vsel %vm284, %v268, %v300
        %317 = vst [vmem:[%s163] sm:$0xff] %v301
        %318 = vst [vmem:[%s163 + $0x8] sm:$0xff] %v302
        %319 = vst [vmem:[%s163 + $0x10] sm:$0xff] %v303
        %320 = vst [vmem:[%s163 + $0x18] sm:$0xff] %v304
        %321 = vst [vmem:[%s163 + $0x20] sm:$0xff] %v305
        %322 = vst [vmem:[%s163 + $0x28] sm:$0xff] %v306
        %323 = vst [vmem:[%s163 + $0x30] sm:$0xff] %v307
        %324 = vst [vmem:[%s163 + $0x38] sm:$0xff] %v308
        %325 = vst [vmem:[%s163 + $0x40] sm:$0xff] %v309
        %326 = vst [vmem:[%s163 + $0x48] sm:$0xff] %v310
        %327 = vst [vmem:[%s163 + $0x50] sm:$0xff] %v311
        %328 = vst [vmem:[%s163 + $0x58] sm:$0xff] %v312
        %329 = vst [vmem:[%s163 + $0x60] sm:$0xff] %v313
        %330 = vst [vmem:[%s163 + $0x68] sm:$0xff] %v314
        %331 = vst [vmem:[%s163 + $0x70] sm:$0xff] %v315
        %332 = vst [vmem:[%s163 + $0x78] sm:$0xff] %v316
        %s333 = sand.u32 %s93, 1
        %s334 = scalar_lea.sflag [#allocation3], %s333
        %s335 = sand.u32 %s93, 1
        %s336 = smul.addr %s335, 128
        %s337 = scalar_lea.vmem [#allocation2], %s336
        // Predicated region
        $region33: #{local_gcn_forward.3} parent=31 // pred_check
          %p338 = pneg %p103
        $region34: #{local_gcn_forward.3} parent=31 // pred_check_branch
          %340 = sbr.rel (%p338) target = $region36
        $region35: #{local_gcn_forward.3} parent=31 // pred_region
          %s342 = ssub.s32 2048, 2048
          %343 = vsyncadd %s334, %s342
          %s344 = smul.addr %s17, 16
          %s345 = smul.addr %s344, 128
          %s346 = scalar_lea.hbm %s3, %s345
          %s347 = sshll.u32 %s337, 4
          %s348 = int_to_ptr.vmem [resolvable:$true] %s347
          %353 = dma.vmem_to_hbm [thread:$0]  %s348, 2048, %s346, %s334, 512, 512, 32
        $region36: #{local_gcn_forward.3} parent=31 // pred_fallthru
          _
      $region32: #{local_gcn_forward.3} parent=5 // pred_fallthru
        _
      %p354 = scmp.le.s32.totalorder 2, %s12
      // Predicated region
      $region37: #{local_gcn_forward.3} parent=5 // pred_check
        %p355 = pneg %p354
      $region38: #{local_gcn_forward.3} parent=5 // pred_check_branch
        %357 = sbr.rel (%p355) target = $region40
      $region39: #{local_gcn_forward.3} parent=5 // pred_region
        %s358 = ssub.s32 %s12, 2
        // Predicated region
        $region41: #{local_gcn_forward.3} parent=39 // pred_check
          %p359 = pneg %p109
        $region42: #{local_gcn_forward.3} parent=39 // pred_check_branch
          %361 = sbr.rel (%p359) target = $region44
        $region43: #{local_gcn_forward.3} parent=39 // pred_region
          %s362 = sand.u32 %s94, 1
          %s363 = scalar_lea.sflag [#allocation3], %s362
          %s364 = sand.u32 %s94, 1
          %s365 = smul.addr %s364, 128
          %s366 = scalar_lea.vmem [#allocation2], %s365
          %367 = dma.done %s363, 2048
        $region44: #{local_gcn_forward.3} parent=39 // pred_fallthru
          _
      $region40: #{local_gcn_forward.3} parent=5 // pred_fallthru
        _
    $region6: #{local_gcn_forward.3} parent=1 // loop_footer
      %s16 = sadd.s32 1, %s12
    $region7: #{local_gcn_forward.3} parent=1 // loop_footer_branch
      %11 = sbr.rel target = $region3
    $region8: #{local_gcn_forward.3} parent=1 // loop_exit
      _
    %368 = vsyncpa [#allocation3], 1
    %s369 = scalar_lea.sflag [#allocation3], 1
    %370 = vsyncpa %s369, 1

// kernel: local_gcn_forward.2
$region0: #{local_gcn_forward.2}
  #allocation0 [shape = 'u32[]', space=smem, size = 0x4, offset = 0x4, fixed_abs, tag = 'smem constant byte address 0x4 - core index']
  #allocation1 [shape = 'u32[144,128]{1,0:T(1,128)}', space=vmem, size = 0x12000, scoped, tag = 'internal scratch']
  %s0 = inlined_call_operand.vmem [shape: s32[2,4,32], index: 0, kind: input, shape index: {}]
  %s1 = inlined_call_operand.vmem [shape: f32[2,4,32], index: 1, kind: input, shape index: {}]
  %s2 = inlined_call_operand.vmem [shape: bf16[2,32,512], index: 2, kind: input, shape index: {}]
  %s3 = inlined_call_operand.vmem [shape: bf16[512,512], index: 3, kind: input, shape index: {}]
  %s4 = inlined_call_operand.vmem [shape: f32[1,512], index: 4, kind: input, shape index: {}]
  %s5 = inlined_call_operand.vmem [shape: bf16[2,32,512], index: 5, kind: output, shape index: {0}]
  %s6 = inlined_call_operand.vmem [shape: f32[2,1,512], index: 6, kind: output, shape index: {1}]
  %s7 = inlined_call_operand.vmem [shape: f32[2,1,512], index: 7, kind: output, shape index: {2}]
  %8 = xla_tuple %s5, %s6, %s7
  %s9 = sld [smem:[#allocation0]]
  $region69: #{local_gcn_forward.2} parent=0
    _
  %s11 = ssub.s32 1, %s9
  %s12 = scalar_select 0, %s11, %s9
  loop: start=0, step=1, limit=4
  $region2: #{local_gcn_forward.2} parent=0 // loop_pre_header
    _
  $region3: #{local_gcn_forward.2} parent=0 // loop_header
    %s14 = sphi 0, %s18
    %p15 = scmp.ge.s32.totalorder %s14, 4
    %s24 = sphi 0, %s26
    %s27 = sphi 0, %s24
    %s28 = sphi 0, %s27
    %s44 = sphi 0, %s28
    %s50 = sphi 0, %s52
    %s53 = sphi 0, %s50
    %s54 = sphi 0, %s53
    %s70 = sphi 0, %s54
    %s76 = sphi 0, %s78
    %s79 = sphi 0, %s76
    %s80 = sphi 0, %s79
    %s96 = sphi 0, %s80
    %s100 = sphi 0, %s100
    %s102 = sphi 0, %s100
    %s103 = sphi 0, %s102
    %s117 = sphi 0, %s103
    %s121 = sphi 0, %s121
    %s123 = sphi 0, %s121
    %s124 = sphi 0, %s123
    %s138 = sphi 0, %s124
    %s144 = sphi 0, %s146
    %s147 = sphi 0, %s144
    %s148 = sphi 0, %s147
    %s164 = sphi 0, %s148
    %s170 = sphi 0, %s172
    %s173 = sphi 0, %s170
    %s174 = sphi 0, %s173
    %s190 = sphi 0, %s174
    %s196 = sphi 0, %s198
    %s199 = sphi 0, %s196
    %s200 = sphi 0, %s199
    %s216 = sphi 0, %s200
  $region4: #{local_gcn_forward.2} parent=0 // loop_header_branch
    %17 = sbr.rel (%p15) target = $region8
  $region5: #{local_gcn_forward.2} parent=0 // loop_body
    %s19 = ssub.s32 %s14, 1
    %s20 = ssub.s32 %s14, 2
    %s21 = sadd.s32 %s14, 1
    %s22 = ssub.s32 %s14, %s21
    %p23 = scmp.eq.s32.totalorder %s22, 0
    %s25 = sadd.s32 %s24, 1
    %s26 = scalar_select %p23, %s24, %s25
    %p29 = pneg %p23
    %p30 = scmp.eq.s32.totalorder %s14, 1
    %p31 = por %p29, %p30
    %p32 = scmp.ne.s32.totalorder %s24, %s27
    %p33 = scmp.eq.s32.totalorder %s14, 0
    %p34 = por %p32, %p33
    %p35 = scmp.ne.s32.totalorder %s24, %s27
    %p36 = scmp.eq.s32.totalorder %s19, 1
    %p37 = por %p35, %p36
    %p38 = scmp.ne.s32.totalorder %s27, %s28
    %p39 = scmp.eq.s32.totalorder %s19, 0
    %p40 = por %p38, %p39
    %p41 = scmp.ne.s32.totalorder %s27, %s28
    %p42 = scmp.eq.s32.totalorder %s20, 1
    %p43 = por %p41, %p42
    %p45 = scmp.ne.s32.totalorder %s28, %s44
    %p46 = scmp.eq.s32.totalorder %s20, 0
    %p47 = por %p45, %p46
    %s48 = ssub.s32 %s14, %s21
    %p49 = scmp.eq.s32.totalorder %s48, 0
    %s51 = sadd.s32 %s50, 1
    %s52 = scalar_select %p49, %s50, %s51
    %p55 = pneg %p49
    %p56 = scmp.eq.s32.totalorder %s14, 1
    %p57 = por %p55, %p56
    %p58 = scmp.ne.s32.totalorder %s50, %s53
    %p59 = scmp.eq.s32.totalorder %s14, 0
    %p60 = por %p58, %p59
    %p61 = scmp.ne.s32.totalorder %s50, %s53
    %p62 = scmp.eq.s32.totalorder %s19, 1
    %p63 = por %p61, %p62
    %p64 = scmp.ne.s32.totalorder %s53, %s54
    %p65 = scmp.eq.s32.totalorder %s19, 0
    %p66 = por %p64, %p65
    %p67 = scmp.ne.s32.totalorder %s53, %s54
    %p68 = scmp.eq.s32.totalorder %s20, 1
    %p69 = por %p67, %p68
    %p71 = scmp.ne.s32.totalorder %s54, %s70
    %p72 = scmp.eq.s32.totalorder %s20, 0
    %p73 = por %p71, %p72
    %s74 = ssub.s32 %s14, %s21
    %p75 = scmp.eq.s32.totalorder %s74, 0
    %s77 = sadd.s32 %s76, 1
    %s78 = scalar_select %p75, %s76, %s77
    %p81 = pneg %p75
    %p82 = scmp.eq.s32.totalorder %s14, 1
    %p83 = por %p81, %p82
    %p84 = scmp.ne.s32.totalorder %s76, %s79
    %p85 = scmp.eq.s32.totalorder %s14, 0
    %p86 = por %p84, %p85
    %p87 = scmp.ne.s32.totalorder %s76, %s79
    %p88 = scmp.eq.s32.totalorder %s19, 1
    %p89 = por %p87, %p88
    %p90 = scmp.ne.s32.totalorder %s79, %s80
    %p91 = scmp.eq.s32.totalorder %s19, 0
    %p92 = por %p90, %p91
    %p93 = scmp.ne.s32.totalorder %s79, %s80
    %p94 = scmp.eq.s32.totalorder %s20, 1
    %p95 = por %p93, %p94
    %p97 = scmp.ne.s32.totalorder %s80, %s96
    %p98 = scmp.eq.s32.totalorder %s20, 0
    %p99 = por %p97, %p98
    %s101 = sadd.s32 %s100, 1
    %p104 = scmp.eq.s32.totalorder %s14, 1
    %p105 = scmp.ne.s32.totalorder %s100, %s102
    %p106 = scmp.eq.s32.totalorder %s14, 0
    %p107 = por %p105, %p106
    %p108 = scmp.ne.s32.totalorder %s100, %s102
    %p109 = scmp.eq.s32.totalorder %s19, 1
    %p110 = por %p108, %p109
    %p111 = scmp.ne.s32.totalorder %s102, %s103
    %p112 = scmp.eq.s32.totalorder %s19, 0
    %p113 = por %p111, %p112
    %p114 = scmp.ne.s32.totalorder %s102, %s103
    %p115 = scmp.eq.s32.totalorder %s20, 1
    %p116 = por %p114, %p115
    %p118 = scmp.ne.s32.totalorder %s103, %s117
    %p119 = scmp.eq.s32.totalorder %s20, 0
    %p120 = por %p118, %p119
    %s122 = sadd.s32 %s121, 1
    %p125 = scmp.eq.s32.totalorder %s14, 1
    %p126 = scmp.ne.s32.totalorder %s121, %s123
    %p127 = scmp.eq.s32.totalorder %s14, 0
    %p128 = por %p126, %p127
    %p129 = scmp.ne.s32.totalorder %s121, %s123
    %p130 = scmp.eq.s32.totalorder %s19, 1
    %p131 = por %p129, %p130
    %p132 = scmp.ne.s32.totalorder %s123, %s124
    %p133 = scmp.eq.s32.totalorder %s19, 0
    %p134 = por %p132, %p133
    %p135 = scmp.ne.s32.totalorder %s123, %s124
    %p136 = scmp.eq.s32.totalorder %s20, 1
    %p137 = por %p135, %p136
    %p139 = scmp.ne.s32.totalorder %s124, %s138
    %p140 = scmp.eq.s32.totalorder %s20, 0
    %p141 = por %p139, %p140
    %s142 = ssub.s32 %s14, %s21
    %p143 = scmp.eq.s32.totalorder %s142, 0
    %s145 = sadd.s32 %s144, 1
    %s146 = scalar_select %p143, %s144, %s145
    %p149 = pneg %p143
    %p150 = scmp.eq.s32.totalorder %s14, 1
    %p151 = por %p149, %p150
    %p152 = scmp.ne.s32.totalorder %s144, %s147
    %p153 = scmp.eq.s32.totalorder %s14, 0
    %p154 = por %p152, %p153
    %p155 = scmp.ne.s32.totalorder %s144, %s147
    %p156 = scmp.eq.s32.totalorder %s19, 1
    %p157 = por %p155, %p156
    %p158 = scmp.ne.s32.totalorder %s147, %s148
    %p159 = scmp.eq.s32.totalorder %s19, 0
    %p160 = por %p158, %p159
    %p161 = scmp.ne.s32.totalorder %s147, %s148
    %p162 = scmp.eq.s32.totalorder %s20, 1
    %p163 = por %p161, %p162
    %p165 = scmp.ne.s32.totalorder %s148, %s164
    %p166 = scmp.eq.s32.totalorder %s20, 0
    %p167 = por %p165, %p166
    %s168 = ssub.s32 %s14, %s21
    %p169 = scmp.eq.s32.totalorder %s168, 0
    %s171 = sadd.s32 %s170, 1
    %s172 = scalar_select %p169, %s170, %s171
    %p175 = pneg %p169
    %p176 = scmp.eq.s32.totalorder %s14, 1
    %p177 = por %p175, %p176
    %p178 = scmp.ne.s32.totalorder %s170, %s173
    %p179 = scmp.eq.s32.totalorder %s14, 0
    %p180 = por %p178, %p179
    %p181 = scmp.ne.s32.totalorder %s170, %s173
    %p182 = scmp.eq.s32.totalorder %s19, 1
    %p183 = por %p181, %p182
    %p184 = scmp.ne.s32.totalorder %s173, %s174
    %p185 = scmp.eq.s32.totalorder %s19, 0
    %p186 = por %p184, %p185
    %p187 = scmp.ne.s32.totalorder %s173, %s174
    %p188 = scmp.eq.s32.totalorder %s20, 1
    %p189 = por %p187, %p188
    %p191 = scmp.ne.s32.totalorder %s174, %s190
    %p192 = scmp.eq.s32.totalorder %s20, 0
    %p193 = por %p191, %p192
    %s194 = ssub.s32 %s14, %s21
    %p195 = scmp.eq.s32.totalorder %s194, 0
    %s197 = sadd.s32 %s196, 1
    %s198 = scalar_select %p195, %s196, %s197
    %p201 = pneg %p195
    %p202 = scmp.eq.s32.totalorder %s14, 1
    %p203 = por %p201, %p202
    %p204 = scmp.ne.s32.totalorder %s196, %s199
    %p205 = scmp.eq.s32.totalorder %s14, 0
    %p206 = por %p204, %p205
    %p207 = scmp.ne.s32.totalorder %s196, %s199
    %p208 = scmp.eq.s32.totalorder %s19, 1
    %p209 = por %p207, %p208
    %p210 = scmp.ne.s32.totalorder %s199, %s200
    %p211 = scmp.eq.s32.totalorder %s19, 0
    %p212 = por %p210, %p211
    %p213 = scmp.ne.s32.totalorder %s199, %s200
    %p214 = scmp.eq.s32.totalorder %s20, 1
    %p215 = por %p213, %p214
    %p217 = scmp.ne.s32.totalorder %s200, %s216
    %p218 = scmp.eq.s32.totalorder %s20, 0
    %p219 = por %p217, %p218
    %p220 = scmp.le.s32.totalorder 1, %s14
    %p221 = scmp.lt.s32.totalorder %s14, 3
    %p222 = pnand %p220, %p221
    %p223 = pneg %p222
    // Predicated region
    $region9: #{local_gcn_forward.2} parent=5 // pred_check
      _
    $region10: #{local_gcn_forward.2} parent=5 // pred_check_branch
      %225 = sbr.rel (%p222) target = $region12
    $region11: #{local_gcn_forward.2} parent=5 // pred_region
      %s226 = ssub.s32 %s14, 1
      // Predicated region
      $region13: #{local_gcn_forward.2} parent=11 // pred_check
        %p227 = pneg %p113
      $region14: #{local_gcn_forward.2} parent=11 // pred_check_branch
        %229 = sbr.rel (%p227) target = $region16
      $region15: #{local_gcn_forward.2} parent=11 // pred_region
        _
      $region16: #{local_gcn_forward.2} parent=11 // pred_fallthru
        _
      // Predicated region
      $region17: #{local_gcn_forward.2} parent=11 // pred_check
        %p230 = pneg %p134
      $region18: #{local_gcn_forward.2} parent=11 // pred_check_branch
        %232 = sbr.rel (%p230) target = $region20
      $region19: #{local_gcn_forward.2} parent=11 // pred_region
        _
      $region20: #{local_gcn_forward.2} parent=11 // pred_fallthru
        _
    $region12: #{local_gcn_forward.2} parent=5 // pred_fallthru
      _
    %p233 = scmp.lt.s32.totalorder %s14, 2
    // Predicated region
    $region21: #{local_gcn_forward.2} parent=5 // pred_check
      %p234 = pneg %p233
    $region22: #{local_gcn_forward.2} parent=5 // pred_check_branch
      %236 = sbr.rel (%p234) target = $region24
    $region23: #{local_gcn_forward.2} parent=5 // pred_region
      // Predicated region
      $region25: #{local_gcn_forward.2} parent=23 // pred_check
        %p237 = pneg %p34
      $region26: #{local_gcn_forward.2} parent=23 // pred_check_branch
        %239 = sbr.rel (%p237) target = $region28
      $region27: #{local_gcn_forward.2} parent=23 // pred_region
        %p240 = scmp.lt.s32.totalorder %s14, 1
        %s241 = scalar_select %p240, %s14, 1
        %s242 = smul.addr %s241, 4
        %s243 = scalar_lea.vmem %s0, %s242
      $region28: #{local_gcn_forward.2} parent=23 // pred_fallthru
        _
      // Predicated region
      $region29: #{local_gcn_forward.2} parent=23 // pred_check
        %p244 = pneg %p60
      $region30: #{local_gcn_forward.2} parent=23 // pred_check_branch
        %246 = sbr.rel (%p244) target = $region32
      $region31: #{local_gcn_forward.2} parent=23 // pred_region
        %p247 = scmp.lt.s32.totalorder %s14, 1
        %s248 = scalar_select %p247, %s14, 1
        %s249 = smul.addr %s248, 4
        %s250 = scalar_lea.vmem %s1, %s249
      $region32: #{local_gcn_forward.2} parent=23 // pred_fallthru
        _
      // Predicated region
      $region33: #{local_gcn_forward.2} parent=23 // pred_check
        %p251 = pneg %p86
      $region34: #{local_gcn_forward.2} parent=23 // pred_check_branch
        %253 = sbr.rel (%p251) target = $region36
      $region35: #{local_gcn_forward.2} parent=23 // pred_region
        %p254 = scmp.lt.s32.totalorder %s14, 1
        %s255 = scalar_select %p254, %s14, 1
        %s256 = smul.addr %s255, 16
        %s257 = smul.addr %s256, 4
        %s258 = scalar_lea.vmem %s2, %s257
      $region36: #{local_gcn_forward.2} parent=23 // pred_fallthru
        _
    $region24: #{local_gcn_forward.2} parent=5 // pred_fallthru
      _
    %p259 = scmp.le.s32.totalorder 1, %s14
    %p260 = scmp.lt.s32.totalorder %s14, 3
    %p261 = pnand %p259, %p260
    %p262 = pneg %p261
    // Predicated region
    $region37: #{local_gcn_forward.2} parent=5 // pred_check
      _
    $region38: #{local_gcn_forward.2} parent=5 // pred_check_branch
      %264 = sbr.rel (%p261) target = $region40
    $region39: #{local_gcn_forward.2} parent=5 // pred_region
      %s265 = ssub.s32 %s14, 1
      %p266 = scmp.lt.s32.totalorder %s19, 1
      %s267 = scalar_select %p266, %s19, 1
      %s268 = smul.addr %s267, 4
      %s269 = scalar_lea.vmem %s0, %s268
      %p270 = pneg %p40
      %p271 = pneg %p37
      %p272 = scmp.lt.s32.totalorder %s19, 1
      %s273 = scalar_select %p272, %s19, 1
      %s274 = smul.addr %s273, 4
      %s275 = scalar_lea.vmem %s1, %s274
      %p276 = pneg %p66
      %p277 = pneg %p63
      %p278 = scmp.lt.s32.totalorder %s19, 1
      %s279 = scalar_select %p278, %s19, 1
      %s280 = smul.addr %s279, 16
      %s281 = smul.addr %s280, 4
      %s282 = scalar_lea.vmem %s2, %s281
      %p283 = pneg %p92
      %p284 = pneg %p89
      %p285 = pneg %p113
      %p286 = pneg %p110
      %p287 = pneg %p134
      %p288 = pneg %p131
      %p289 = pneg %p160
      %p290 = pneg %p157
      %p291 = scmp.lt.s32.totalorder %s19, 1
      %s292 = scalar_select %p291, %s19, 1
      %s293 = smul.addr %s292, 16
      %s294 = smul.addr %s293, 4
      %s295 = scalar_lea.vmem %s5, %s294
      %p296 = pneg %p186
      %p297 = pneg %p183
      %p298 = scmp.lt.s32.totalorder %s19, 1
      %s299 = scalar_select %p298, %s19, 1
      %s300 = smul.addr %s299, 4
      %s301 = scalar_lea.vmem %s6, %s300
      %p302 = pneg %p212
      %p303 = pneg %p209
      %p304 = scmp.lt.s32.totalorder %s19, 1
      %s305 = scalar_select %p304, %s19, 1
      %s306 = smul.addr %s305, 4
      %s307 = scalar_lea.vmem %s7, %s306
      %p308 = scmp.lt.s32.totalorder %s19, 1
      %s309 = scalar_select %p308, %s19, 1
      %s310 = smul.addr %s309, 4
      %s311 = scalar_lea.vmem %s0, %s310
      %p312 = scmp.lt.s32.totalorder %s19, 1
      %s313 = scalar_select %p312, %s19, 1
      %s314 = smul.addr %s313, 4
      %s315 = scalar_lea.vmem %s1, %s314
      %p316 = scmp.lt.s32.totalorder %s19, 1
      %s317 = scalar_select %p316, %s19, 1
      %s318 = smul.addr %s317, 16
      %s319 = smul.addr %s318, 4
      %s320 = scalar_lea.vmem %s2, %s319
      %p321 = scmp.lt.s32.totalorder %s19, 1
      %s322 = scalar_select %p321, %s19, 1
      %s323 = smul.addr %s322, 16
      %s324 = smul.addr %s323, 4
      %s325 = scalar_lea.vmem %s5, %s324
      %p326 = scmp.lt.s32.totalorder %s19, 1
      %s327 = scalar_select %p326, %s19, 1
      %s328 = smul.addr %s327, 4
      %s329 = scalar_lea.vmem %s6, %s328
      %p330 = scmp.lt.s32.totalorder %s19, 1
      %s331 = scalar_select %p330, %s19, 1
      %s332 = smul.addr %s331, 4
      %s333 = scalar_lea.vmem %s7, %s332
      %v335 = vld [vmem:[%s311] sm:$0xf]
      %v336 = vld [vmem:[%s315] sm:$0xf]
      %v337 = vlaneseq
      %v338 = vshrl.u32 %v337, 7
      %v339 = vadd.s32 %v338, 8
      %v340 = vadd.s32 %v338, 16
      %v341 = vadd.s32 %v338, 24
      %v342 = vlaneseq
      %v343 = vshrl.u32 %v342, 7
      %v344 = vsub.s32 0, %v343
      %v345 = vrot.slane %v335, %v344
      %vm346 = vcmp.eq.s32.totalorder %v345, %v338
      %vm347 = vcmp.eq.s32.totalorder %v345, %v339
      %vm348 = vcmp.eq.s32.totalorder %v345, %v340
      %vm349 = vcmp.eq.s32.totalorder %v345, %v341
      %v350 = vlaneseq
      %v351 = vshrl.u32 %v350, 7
      %v352 = vsub.s32 0, %v351
      %v353 = vrot.slane %v336, %v352
      %v354 = vsel %vm346, %v353, 0.0
      %v355 = vsel %vm347, %v353, 0.0
      %v356 = vsel %vm348, %v353, 0.0
      %v357 = vsel %vm349, %v353, 0.0
      %v358 = vadd.f32 %v354, 0.0
      %v359 = vadd.f32 %v355, 0.0
      %v360 = vadd.f32 %v356, 0.0
      %v361 = vadd.f32 %v357, 0.0
      %v362 = vlaneseq
      %v363 = vshrl.u32 %v362, 7
      %v364 = vsub.s32 1, %v363
      %v365 = vrot.slane %v335, %v364
      %vm366 = vcmp.eq.s32.totalorder %v365, %v338
      %vm367 = vcmp.eq.s32.totalorder %v365, %v339
      %vm368 = vcmp.eq.s32.totalorder %v365, %v340
      %vm369 = vcmp.eq.s32.totalorder %v365, %v341
      %v370 = vlaneseq
      %v371 = vshrl.u32 %v370, 7
      %v372 = vsub.s32 1, %v371
      %v373 = vrot.slane %v336, %v372
      %v374 = vsel %vm366, %v373, 0.0
      %v375 = vsel %vm367, %v373, 0.0
      %v376 = vsel %vm368, %v373, 0.0
      %v377 = vsel %vm369, %v373, 0.0
      %v378 = vadd.f32 %v358, %v374
      %v379 = vadd.f32 %v359, %v375
      %v380 = vadd.f32 %v360, %v376
      %v381 = vadd.f32 %v361, %v377
      %v382 = vlaneseq
      %v383 = vshrl.u32 %v382, 7
      %v384 = vsub.s32 2, %v383
      %v385 = vrot.slane %v335, %v384
      %vm386 = vcmp.eq.s32.totalorder %v385, %v338
      %vm387 = vcmp.eq.s32.totalorder %v385, %v339
      %vm388 = vcmp.eq.s32.totalorder %v385, %v340
      %vm389 = vcmp.eq.s32.totalorder %v385, %v341
      %v390 = vlaneseq
      %v391 = vshrl.u32 %v390, 7
      %v392 = vsub.s32 2, %v391
      %v393 = vrot.slane %v336, %v392
      %v394 = vsel %vm386, %v393, 0.0
      %v395 = vsel %vm387, %v393, 0.0
      %v396 = vsel %vm388, %v393, 0.0
      %v397 = vsel %vm389, %v393, 0.0
      %v398 = vadd.f32 %v378, %v394
      %v399 = vadd.f32 %v379, %v395
      %v400 = vadd.f32 %v380, %v396
      %v401 = vadd.f32 %v381, %v397
      %v402 = vlaneseq
      %v403 = vshrl.u32 %v402, 7
      %v404 = vsub.s32 3, %v403
      %v405 = vrot.slane %v335, %v404
      %vm406 = vcmp.eq.s32.totalorder %v405, %v338
      %vm407 = vcmp.eq.s32.totalorder %v405, %v339
      %vm408 = vcmp.eq.s32.totalorder %v405, %v340
      %vm409 = vcmp.eq.s32.totalorder %v405, %v341
      %v410 = vlaneseq
      %v411 = vshrl.u32 %v410, 7
      %v412 = vsub.s32 3, %v411
      %v413 = vrot.slane %v336, %v412
      %v414 = vsel %vm406, %v413, 0.0
      %v415 = vsel %vm407, %v413, 0.0
      %v416 = vsel %vm408, %v413, 0.0
      %v417 = vsel %vm409, %v413, 0.0
      %v418 = vadd.f32 %v398, %v414
      %v419 = vadd.f32 %v399, %v415
      %v420 = vadd.f32 %v400, %v416
      %v421 = vadd.f32 %v401, %v417
      %v422 = vpack.c.bf16 %v419, %v418
      %v423 = vpack.c.bf16 %v421, %v420
      %v424 = vld [vmem:[%s320] sm:$0xff]
      %v425 = vld [vmem:[%s320 + $0x8] sm:$0xff]
      %v426 = vld [vmem:[%s320 + $0x10] sm:$0xff]
      %v427 = vld [vmem:[%s320 + $0x18] sm:$0xff]
      %v428 = vld [vmem:[%s320 + $0x20] sm:$0xff]
      %v429 = vld [vmem:[%s320 + $0x28] sm:$0xff]
      %v430 = vld [vmem:[%s320 + $0x30] sm:$0xff]
      %v431 = vld [vmem:[%s320 + $0x38] sm:$0xff]
      %432 = vxpose.xlu0.c.b16.start [1/8] %v422, 128
      %433 = vxpose.xlu0.c.b16.cont [2/8] %v423, 128
      %434 = vxpose.xlu0.c.b16.cont [3/8] 0, 128
      %435 = vxpose.xlu0.c.b16.cont [4/8] 0, 128
      %436 = vxpose.xlu0.c.b16.cont [5/8] 0, 128
      %437 = vxpose.xlu0.c.b16.cont [6/8] 0, 128
      %438 = vxpose.xlu0.c.b16.cont [7/8] 0, 128
      %439 = vxpose.xlu0.c.b16.end [8/8] 0, 128
      %v440 = vpop.trf.xlu0
      %v441 = vpop.trf.xlu0
      %v442 = vpop.trf.xlu0
      %v443 = vpop.trf.xlu0
      %v444 = vpop.trf.xlu0
      %v445 = vpop.trf.xlu0
      %v446 = vpop.trf.xlu0
      %v447 = vpop.trf.xlu0
      %v456 = vunpack.c.l.b16 %v424
      %v457 = vunpack.c.h.b16 %v424
      %v458 = vunpack.c.l.b16 %v425
      %v459 = vunpack.c.h.b16 %v425
      %v460 = vunpack.c.l.b16 %v426
      %v461 = vunpack.c.h.b16 %v426
      %v462 = vunpack.c.l.b16 %v427
      %v463 = vunpack.c.h.b16 %v427
      %v464 = vunpack.c.l.b16 %v428
      %v465 = vunpack.c.h.b16 %v428
      %v466 = vunpack.c.l.b16 %v429
      %v467 = vunpack.c.h.b16 %v429
      %v468 = vunpack.c.l.b16 %v430
      %v469 = vunpack.c.h.b16 %v430
      %v470 = vunpack.c.l.b16 %v431
      %v471 = vunpack.c.h.b16 %v431
      %v472 = vpack.c.b16 %v460, %v456
      %v473 = vpack.c.b16 %v461, %v457
      %v474 = vpack.c.b16 %v462, %v458
      %v475 = vpack.c.b16 %v463, %v459
      %v476 = vpack.c.b16 %v468, %v464
      %v477 = vpack.c.b16 %v469, %v465
      %v478 = vpack.c.b16 %v470, %v466
      %v479 = vpack.c.b16 %v471, %v467
      %vm488 = vcmask 261120
      %v490 = vsel %vm488, %v440, 0
      %v493 = vsel %vm488, %v441, 0
      %495 = vmatprep.subr.bf16.mxu0 %v473
      %496 = vmatpush1.bf16.msra.mxu0 %v472
      %497 = vmatprep.subr.bf16.mxu0 %v477
      %498 = vmatpush1.bf16.msra.mxu0 %v476
      %499 = vmatprep.subr.bf16.mxu0 0
      %500 = vmatpush1.bf16.msra.mxu0 0
      %501 = vmatprep.subr.bf16.mxu0 0
      %502 = vmatpush1.bf16.msra.mxu0 0
      %503 = vmatprep.subr.bf16.mxu0 0
      %504 = vmatpush1.bf16.msra.mxu0 0
      %505 = vmatprep.subr.bf16.mxu0 0
      %506 = vmatpush1.bf16.msra.mxu0 0
      %507 = vmatprep.subr.bf16.mxu0 0
      %508 = vmatpush1.bf16.msra.mxu0 0
      %509 = vmatprep.subr.bf16.mxu0 0
      %510 = vmatpush1.bf16.msra.mxu0 0
      %511 = vmatprep.subr.bf16.mxu0 0
      %512 = vmatpush1.bf16.msra.mxu0 0
      %513 = vmatprep.subr.bf16.mxu0 0
      %514 = vmatpush1.bf16.msra.mxu0 0
      %515 = vmatprep.subr.bf16.mxu0 0
      %516 = vmatpush1.bf16.msra.mxu0 0
      %517 = vmatprep.subr.bf16.mxu0 0
      %518 = vmatpush1.bf16.msra.mxu0 0
      %519 = vmatprep.subr.bf16.mxu0 0
      %520 = vmatpush1.bf16.msra.mxu0 0
      %521 = vmatprep.subr.bf16.mxu0 0
      %522 = vmatpush1.bf16.msra.mxu0 0
      %523 = vmatprep.subr.bf16.mxu0 0
      %524 = vmatpush1.bf16.msra.mxu0 0
      %525 = vmatprep.subr.bf16.mxu0 0
      %526 = vmatpush1.bf16.msra.mxu0 0
      %527 = vmatprep.mubr.bf16.mxu0 0
      %528 = vmatmul.mubr.bf16.gmra.mrb[0].mxu0 %v490
      %v529 = vpop.f32.mrb[0].mxu0
      %v530 = vadd.f32 0.0, %v529
      %v531 = vpop.f32.mrb[0].mxu0
      %v532 = vadd.f32 0.0, %v531
      %v533 = vpop.f32.mrb[0].mxu0
      %v534 = vadd.f32 0.0, %v533
      %v535 = vpop.f32.mrb[0].mxu0
      %v536 = vadd.f32 0.0, %v535
      %537 = vmatprep.mubr.bf16.mxu0 0
      %538 = vmatmul.mubr.bf16.gmra.mrb[0].mxu0 %v493
      %v539 = vpop.f32.mrb[0].mxu0
      %v540 = vadd.f32 0.0, %v539
      %v541 = vpop.f32.mrb[0].mxu0
      %v542 = vadd.f32 0.0, %v541
      %v543 = vpop.f32.mrb[0].mxu0
      %v544 = vadd.f32 0.0, %v543
      %v545 = vpop.f32.mrb[0].mxu0
      %v546 = vadd.f32 0.0, %v545
      %547 = vdwg.mxu0
      %548 = vmatprep.subr.bf16.mxu0 %v475
      %549 = vmatpush1.bf16.msra.mxu0 %v474
      %550 = vmatprep.subr.bf16.mxu0 %v479
      %551 = vmatpush1.bf16.msra.mxu0 %v478
      %552 = vmatprep.subr.bf16.mxu0 0
      %553 = vmatpush1.bf16.msra.mxu0 0
      %554 = vmatprep.subr.bf16.mxu0 0
      %555 = vmatpush1.bf16.msra.mxu0 0
      %556 = vmatprep.subr.bf16.mxu0 0
      %557 = vmatpush1.bf16.msra.mxu0 0
      %558 = vmatprep.subr.bf16.mxu0 0
      %559 = vmatpush1.bf16.msra.mxu0 0
      %560 = vmatprep.subr.bf16.mxu0 0
      %561 = vmatpush1.bf16.msra.mxu0 0
      %562 = vmatprep.subr.bf16.mxu0 0
      %563 = vmatpush1.bf16.msra.mxu0 0
      %564 = vmatprep.subr.bf16.mxu0 0
      %565 = vmatpush1.bf16.msra.mxu0 0
      %566 = vmatprep.subr.bf16.mxu0 0
      %567 = vmatpush1.bf16.msra.mxu0 0
      %568 = vmatprep.subr.bf16.mxu0 0
      %569 = vmatpush1.bf16.msra.mxu0 0
      %570 = vmatprep.subr.bf16.mxu0 0
      %571 = vmatpush1.bf16.msra.mxu0 0
      %572 = vmatprep.subr.bf16.mxu0 0
      %573 = vmatpush1.bf16.msra.mxu0 0
      %574 = vmatprep.subr.bf16.mxu0 0
      %575 = vmatpush1.bf16.msra.mxu0 0
      %576 = vmatprep.subr.bf16.mxu0 0
      %577 = vmatpush1.bf16.msra.mxu0 0
      %578 = vmatprep.subr.bf16.mxu0 0
      %579 = vmatpush1.bf16.msra.mxu0 0
      %580 = vmatprep.mubr.bf16.mxu0 0
      %581 = vmatmul.mubr.bf16.gmra.mrb[0].mxu0 %v490
      %v582 = vpop.f32.mrb[0].mxu0
      %v583 = vadd.f32 0.0, %v582
      %v584 = vpop.f32.mrb[0].mxu0
      %v585 = vadd.f32 0.0, %v584
      %v586 = vpop.f32.mrb[0].mxu0
      %v587 = vadd.f32 0.0, %v586
      %v588 = vpop.f32.mrb[0].mxu0
      %v589 = vadd.f32 0.0, %v588
      %590 = vmatprep.mubr.bf16.mxu0 0
      %591 = vmatmul.mubr.bf16.gmra.mrb[0].mxu0 %v493
      %v592 = vpop.f32.mrb[0].mxu0
      %v593 = vadd.f32 0.0, %v592
      %v594 = vpop.f32.mrb[0].mxu0
      %v595 = vadd.f32 0.0, %v594
      %v596 = vpop.f32.mrb[0].mxu0
      %v597 = vadd.f32 0.0, %v596
      %v598 = vpop.f32.mrb[0].mxu0
      %v599 = vadd.f32 0.0, %v598
      %600 = vdwg.mxu0
      %v601 = vpack.c.bf16 %v534, %v530
      %v602 = vpack.c.bf16 %v536, %v532
      %v603 = vpack.c.bf16 %v587, %v583
      %v604 = vpack.c.bf16 %v589, %v585
      %v605 = vpack.c.bf16 %v544, %v540
      %v606 = vpack.c.bf16 %v546, %v542
      %v607 = vpack.c.bf16 %v597, %v593
      %v608 = vpack.c.bf16 %v599, %v595
      %v609 = vld [vmem:[%s3] sm:$0xff]
      %v610 = vld [vmem:[%s3 + $0x8] sm:$0xff]
      %v611 = vld [vmem:[%s3 + $0x10] sm:$0xff]
      %v612 = vld [vmem:[%s3 + $0x18] sm:$0xff]
      %v613 = vld [vmem:[%s3 + $0x20] sm:$0xff]
      %v614 = vld [vmem:[%s3 + $0x28] sm:$0xff]
      %v615 = vld [vmem:[%s3 + $0x30] sm:$0xff]
      %v616 = vld [vmem:[%s3 + $0x38] sm:$0xff]
      %v617 = vld [vmem:[%s3 + $0x40] sm:$0xff]
      %v618 = vld [vmem:[%s3 + $0x48] sm:$0xff]
      %v619 = vld [vmem:[%s3 + $0x50] sm:$0xff]
      %v620 = vld [vmem:[%s3 + $0x58] sm:$0xff]
      %v621 = vld [vmem:[%s3 + $0x60] sm:$0xff]
      %v622 = vld [vmem:[%s3 + $0x68] sm:$0xff]
      %v623 = vld [vmem:[%s3 + $0x70] sm:$0xff]
      %v624 = vld [vmem:[%s3 + $0x78] sm:$0xff]
      %v625 = vld [vmem:[%s3 + $0x80] sm:$0xff]
      %v626 = vld [vmem:[%s3 + $0x88] sm:$0xff]
      %v627 = vld [vmem:[%s3 + $0x90] sm:$0xff]
      %v628 = vld [vmem:[%s3 + $0x98] sm:$0xff]
      %v629 = vld [vmem:[%s3 + $0xa0] sm:$0xff]
      %v630 = vld [vmem:[%s3 + $0xa8] sm:$0xff]
      %v631 = vld [vmem:[%s3 + $0xb0] sm:$0xff]
      %v632 = vld [vmem:[%s3 + $0xb8] sm:$0xff]
      %v633 = vld [vmem:[%s3 + $0xc0] sm:$0xff]
      %v634 = vld [vmem:[%s3 + $0xc8] sm:$0xff]
      %v635 = vld [vmem:[%s3 + $0xd0] sm:$0xff]
      %v636 = vld [vmem:[%s3 + $0xd8] sm:$0xff]
      %v637 = vld [vmem:[%s3 + $0xe0] sm:$0xff]
      %v638 = vld [vmem:[%s3 + $0xe8] sm:$0xff]
      %v639 = vld [vmem:[%s3 + $0xf0] sm:$0xff]
      %v640 = vld [vmem:[%s3 + $0xf8] sm:$0xff]
      %v641 = vld [vmem:[%s3 + $0x100] sm:$0xff]
      %v642 = vld [vmem:[%s3 + $0x108] sm:$0xff]
      %v643 = vld [vmem:[%s3 + $0x110] sm:$0xff]
      %v644 = vld [vmem:[%s3 + $0x118] sm:$0xff]
      %v645 = vld [vmem:[%s3 + $0x120] sm:$0xff]
      %v646 = vld [vmem:[%s3 + $0x128] sm:$0xff]
      %v647 = vld [vmem:[%s3 + $0x130] sm:$0xff]
      %v648 = vld [vmem:[%s3 + $0x138] sm:$0xff]
      %v649 = vld [vmem:[%s3 + $0x140] sm:$0xff]
      %v650 = vld [vmem:[%s3 + $0x148] sm:$0xff]
      %v651 = vld [vmem:[%s3 + $0x150] sm:$0xff]
      %v652 = vld [vmem:[%s3 + $0x158] sm:$0xff]
      %v653 = vld [vmem:[%s3 + $0x160] sm:$0xff]
      %v654 = vld [vmem:[%s3 + $0x168] sm:$0xff]
      %v655 = vld [vmem:[%s3 + $0x170] sm:$0xff]
      %v656 = vld [vmem:[%s3 + $0x178] sm:$0xff]
      %v657 = vld [vmem:[%s3 + $0x180] sm:$0xff]
      %v658 = vld [vmem:[%s3 + $0x188] sm:$0xff]
      %v659 = vld [vmem:[%s3 + $0x190] sm:$0xff]
      %v660 = vld [vmem:[%s3 + $0x198] sm:$0xff]
      %v661 = vld [vmem:[%s3 + $0x1a0] sm:$0xff]
      %v662 = vld [vmem:[%s3 + $0x1a8] sm:$0xff]
      %v663 = vld [vmem:[%s3 + $0x1b0] sm:$0xff]
      %v664 = vld [vmem:[%s3 + $0x1b8] sm:$0xff]
      %v665 = vld [vmem:[%s3 + $0x1c0] sm:$0xff]
      %v666 = vld [vmem:[%s3 + $0x1c8] sm:$0xff]
      %v667 = vld [vmem:[%s3 + $0x1d0] sm:$0xff]
      %v668 = vld [vmem:[%s3 + $0x1d8] sm:$0xff]
      %v669 = vld [vmem:[%s3 + $0x1e0] sm:$0xff]
      %v670 = vld [vmem:[%s3 + $0x1e8] sm:$0xff]
      %v671 = vld [vmem:[%s3 + $0x1f0] sm:$0xff]
      %v672 = vld [vmem:[%s3 + $0x1f8] sm:$0xff]
      %v673 = vld [vmem:[%s3 + $0x200] sm:$0xff]
      %v674 = vld [vmem:[%s3 + $0x208] sm:$0xff]
      %v675 = vld [vmem:[%s3 + $0x210] sm:$0xff]
      %v676 = vld [vmem:[%s3 + $0x218] sm:$0xff]
      %v677 = vld [vmem:[%s3 + $0x220] sm:$0xff]
      %v678 = vld [vmem:[%s3 + $0x228] sm:$0xff]
      %v679 = vld [vmem:[%s3 + $0x230] sm:$0xff]
      %v680 = vld [vmem:[%s3 + $0x238] sm:$0xff]
      %v681 = vld [vmem:[%s3 + $0x240] sm:$0xff]
      %v682 = vld [vmem:[%s3 + $0x248] sm:$0xff]
      %v683 = vld [vmem:[%s3 + $0x250] sm:$0xff]
      %v684 = vld [vmem:[%s3 + $0x258] sm:$0xff]
      %v685 = vld [vmem:[%s3 + $0x260] sm:$0xff]
      %v686 = vld [vmem:[%s3 + $0x268] sm:$0xff]
      %v687 = vld [vmem:[%s3 + $0x270] sm:$0xff]
      %v688 = vld [vmem:[%s3 + $0x278] sm:$0xff]
      %v689 = vld [vmem:[%s3 + $0x280] sm:$0xff]
      %v690 = vld [vmem:[%s3 + $0x288] sm:$0xff]
      %v691 = vld [vmem:[%s3 + $0x290] sm:$0xff]
      %v692 = vld [vmem:[%s3 + $0x298] sm:$0xff]
      %v693 = vld [vmem:[%s3 + $0x2a0] sm:$0xff]
      %v694 = vld [vmem:[%s3 + $0x2a8] sm:$0xff]
      %v695 = vld [vmem:[%s3 + $0x2b0] sm:$0xff]
      %v696 = vld [vmem:[%s3 + $0x2b8] sm:$0xff]
      %v697 = vld [vmem:[%s3 + $0x2c0] sm:$0xff]
      %v698 = vld [vmem:[%s3 + $0x2c8] sm:$0xff]
      %v699 = vld [vmem:[%s3 + $0x2d0] sm:$0xff]
      %v700 = vld [vmem:[%s3 + $0x2d8] sm:$0xff]
      %v701 = vld [vmem:[%s3 + $0x2e0] sm:$0xff]
      %v702 = vld [vmem:[%s3 + $0x2e8] sm:$0xff]
      %v703 = vld [vmem:[%s3 + $0x2f0] sm:$0xff]
      %v704 = vld [vmem:[%s3 + $0x2f8] sm:$0xff]
      %v705 = vld [vmem:[%s3 + $0x300] sm:$0xff]
      %v706 = vld [vmem:[%s3 + $0x308] sm:$0xff]
      %v707 = vld [vmem:[%s3 + $0x310] sm:$0xff]
      %v708 = vld [vmem:[%s3 + $0x318] sm:$0xff]
      %v709 = vld [vmem:[%s3 + $0x320] sm:$0xff]
      %v710 = vld [vmem:[%s3 + $0x328] sm:$0xff]
      %v711 = vld [vmem:[%s3 + $0x330] sm:$0xff]
      %v712 = vld [vmem:[%s3 + $0x338] sm:$0xff]
      %v713 = vld [vmem:[%s3 + $0x340] sm:$0xff]
      %v714 = vld [vmem:[%s3 + $0x348] sm:$0xff]
      %v715 = vld [vmem:[%s3 + $0x350] sm:$0xff]
      %v716 = vld [vmem:[%s3 + $0x358] sm:$0xff]
      %v717 = vld [vmem:[%s3 + $0x360] sm:$0xff]
      %v718 = vld [vmem:[%s3 + $0x368] sm:$0xff]
      %v719 = vld [vmem:[%s3 + $0x370] sm:$0xff]
      %v720 = vld [vmem:[%s3 + $0x378] sm:$0xff]
      %v721 = vld [vmem:[%s3 + $0x380] sm:$0xff]
      %v722 = vld [vmem:[%s3 + $0x388] sm:$0xff]
      %v723 = vld [vmem:[%s3 + $0x390] sm:$0xff]
      %v724 = vld [vmem:[%s3 + $0x398] sm:$0xff]
      %v725 = vld [vmem:[%s3 + $0x3a0] sm:$0xff]
      %v726 = vld [vmem:[%s3 + $0x3a8] sm:$0xff]
      %v727 = vld [vmem:[%s3 + $0x3b0] sm:$0xff]
      %v728 = vld [vmem:[%s3 + $0x3b8] sm:$0xff]
      %v729 = vld [vmem:[%s3 + $0x3c0] sm:$0xff]
      %v730 = vld [vmem:[%s3 + $0x3c8] sm:$0xff]
      %v731 = vld [vmem:[%s3 + $0x3d0] sm:$0xff]
      %v732 = vld [vmem:[%s3 + $0x3d8] sm:$0xff]
      %v733 = vld [vmem:[%s3 + $0x3e0] sm:$0xff]
      %v734 = vld [vmem:[%s3 + $0x3e8] sm:$0xff]
      %v735 = vld [vmem:[%s3 + $0x3f0] sm:$0xff]
      %v736 = vld [vmem:[%s3 + $0x3f8] sm:$0xff]
      %v737 = vld [vmem:[%s4] sm:$0xf]
      %v739 = vlaneseq
      %v740 = vshrl.u32 %v739, 7
      %v741 = vsub.s32 0, %v740
      %v742 = vrot.slane %v737, %v741
      %v743 = vlaneseq
      %v744 = vshrl.u32 %v743, 7
      %v745 = vsub.s32 1, %v744
      %v746 = vrot.slane %v737, %v745
      %v747 = vlaneseq
      %v748 = vshrl.u32 %v747, 7
      %v749 = vsub.s32 2, %v748
      %v750 = vrot.slane %v737, %v749
      %v751 = vlaneseq
      %v752 = vshrl.u32 %v751, 7
      %v753 = vsub.s32 3, %v752
      %v754 = vrot.slane %v737, %v753
      %v887 = vunpack.c.l.b16 %v609
      %v888 = vunpack.c.h.b16 %v609
      %v889 = vunpack.c.l.b16 %v610
      %v890 = vunpack.c.h.b16 %v610
      %v891 = vunpack.c.l.b16 %v611
      %v892 = vunpack.c.h.b16 %v611
      %v893 = vunpack.c.l.b16 %v612
      %v894 = vunpack.c.h.b16 %v612
      %v895 = vunpack.c.l.b16 %v613
      %v896 = vunpack.c.h.b16 %v613
      %v897 = vunpack.c.l.b16 %v614
      %v898 = vunpack.c.h.b16 %v614
      %v899 = vunpack.c.l.b16 %v615
      %v900 = vunpack.c.h.b16 %v615
      %v901 = vunpack.c.l.b16 %v616
      %v902 = vunpack.c.h.b16 %v616
      %v903 = vunpack.c.l.b16 %v617
      %v904 = vunpack.c.h.b16 %v617
      %v905 = vunpack.c.l.b16 %v618
      %v906 = vunpack.c.h.b16 %v618
      %v907 = vunpack.c.l.b16 %v619
      %v908 = vunpack.c.h.b16 %v619
      %v909 = vunpack.c.l.b16 %v620
      %v910 = vunpack.c.h.b16 %v620
      %v911 = vunpack.c.l.b16 %v621
      %v912 = vunpack.c.h.b16 %v621
      %v913 = vunpack.c.l.b16 %v622
      %v914 = vunpack.c.h.b16 %v622
      %v915 = vunpack.c.l.b16 %v623
      %v916 = vunpack.c.h.b16 %v623
      %v917 = vunpack.c.l.b16 %v624
      %v918 = vunpack.c.h.b16 %v624
      %v919 = vunpack.c.l.b16 %v625
      %v920 = vunpack.c.h.b16 %v625
      %v921 = vunpack.c.l.b16 %v626
      %v922 = vunpack.c.h.b16 %v626
      %v923 = vunpack.c.l.b16 %v627
      %v924 = vunpack.c.h.b16 %v627
      %v925 = vunpack.c.l.b16 %v628
      %v926 = vunpack.c.h.b16 %v628
      %v927 = vunpack.c.l.b16 %v629
      %v928 = vunpack.c.h.b16 %v629
      %v929 = vunpack.c.l.b16 %v630
      %v930 = vunpack.c.h.b16 %v630
      %v931 = vunpack.c.l.b16 %v631
      %v932 = vunpack.c.h.b16 %v631
      %v933 = vunpack.c.l.b16 %v632
      %v934 = vunpack.c.h.b16 %v632
      %v935 = vunpack.c.l.b16 %v633
      %v936 = vunpack.c.h.b16 %v633
      %v937 = vunpack.c.l.b16 %v634
      %v938 = vunpack.c.h.b16 %v634
      %v939 = vunpack.c.l.b16 %v635
      %v940 = vunpack.c.h.b16 %v635
      %v941 = vunpack.c.l.b16 %v636
      %v942 = vunpack.c.h.b16 %v636
      %v943 = vunpack.c.l.b16 %v637
      %v944 = vunpack.c.h.b16 %v637
      %v945 = vunpack.c.l.b16 %v638
      %v946 = vunpack.c.h.b16 %v638
      %v947 = vunpack.c.l.b16 %v639
      %v948 = vunpack.c.h.b16 %v639
      %v949 = vunpack.c.l.b16 %v640
      %v950 = vunpack.c.h.b16 %v640
      %v951 = vunpack.c.l.b16 %v641
      %v952 = vunpack.c.h.b16 %v641
      %v953 = vunpack.c.l.b16 %v642
      %v954 = vunpack.c.h.b16 %v642
      %v955 = vunpack.c.l.b16 %v643
      %v956 = vunpack.c.h.b16 %v643
      %v957 = vunpack.c.l.b16 %v644
      %v958 = vunpack.c.h.b16 %v644
      %v959 = vunpack.c.l.b16 %v645
      %v960 = vunpack.c.h.b16 %v645
      %v961 = vunpack.c.l.b16 %v646
      %v962 = vunpack.c.h.b16 %v646
      %v963 = vunpack.c.l.b16 %v647
      %v964 = vunpack.c.h.b16 %v647
      %v965 = vunpack.c.l.b16 %v648
      %v966 = vunpack.c.h.b16 %v648
      %v967 = vunpack.c.l.b16 %v649
      %v968 = vunpack.c.h.b16 %v649
      %v969 = vunpack.c.l.b16 %v650
      %v970 = vunpack.c.h.b16 %v650
      %v971 = vunpack.c.l.b16 %v651
      %v972 = vunpack.c.h.b16 %v651
      %v973 = vunpack.c.l.b16 %v652
      %v974 = vunpack.c.h.b16 %v652
      %v975 = vunpack.c.l.b16 %v653
      %v976 = vunpack.c.h.b16 %v653
      %v977 = vunpack.c.l.b16 %v654
      %v978 = vunpack.c.h.b16 %v654
      %v979 = vunpack.c.l.b16 %v655
      %v980 = vunpack.c.h.b16 %v655
      %v981 = vunpack.c.l.b16 %v656
      %v982 = vunpack.c.h.b16 %v656
      %v983 = vunpack.c.l.b16 %v657
      %v984 = vunpack.c.h.b16 %v657
      %v985 = vunpack.c.l.b16 %v658
      %v986 = vunpack.c.h.b16 %v658
      %v987 = vunpack.c.l.b16 %v659
      %v988 = vunpack.c.h.b16 %v659
      %v989 = vunpack.c.l.b16 %v660
      %v990 = vunpack.c.h.b16 %v660
      %v991 = vunpack.c.l.b16 %v661
      %v992 = vunpack.c.h.b16 %v661
      %v993 = vunpack.c.l.b16 %v662
      %v994 = vunpack.c.h.b16 %v662
      %v995 = vunpack.c.l.b16 %v663
      %v996 = vunpack.c.h.b16 %v663
      %v997 = vunpack.c.l.b16 %v664
      %v998 = vunpack.c.h.b16 %v664
      %v999 = vunpack.c.l.b16 %v665
      %v1000 = vunpack.c.h.b16 %v665
      %v1001 = vunpack.c.l.b16 %v666
      %v1002 = vunpack.c.h.b16 %v666
      %v1003 = vunpack.c.l.b16 %v667
      %v1004 = vunpack.c.h.b16 %v667
      %v1005 = vunpack.c.l.b16 %v668
      %v1006 = vunpack.c.h.b16 %v668
      %v1007 = vunpack.c.l.b16 %v669
      %v1008 = vunpack.c.h.b16 %v669
      %v1009 = vunpack.c.l.b16 %v670
      %v1010 = vunpack.c.h.b16 %v670
      %v1011 = vunpack.c.l.b16 %v671
      %v1012 = vunpack.c.h.b16 %v671
      %v1013 = vunpack.c.l.b16 %v672
      %v1014 = vunpack.c.h.b16 %v672
      %v1015 = vunpack.c.l.b16 %v673
      %v1016 = vunpack.c.h.b16 %v673
      %v1017 = vunpack.c.l.b16 %v674
      %v1018 = vunpack.c.h.b16 %v674
      %v1019 = vunpack.c.l.b16 %v675
      %v1020 = vunpack.c.h.b16 %v675
      %v1021 = vunpack.c.l.b16 %v676
      %v1022 = vunpack.c.h.b16 %v676
      %v1023 = vunpack.c.l.b16 %v677
      %v1024 = vunpack.c.h.b16 %v677
      %v1025 = vunpack.c.l.b16 %v678
      %v1026 = vunpack.c.h.b16 %v678
      %v1027 = vunpack.c.l.b16 %v679
      %v1028 = vunpack.c.h.b16 %v679
      %v1029 = vunpack.c.l.b16 %v680
      %v1030 = vunpack.c.h.b16 %v680
      %v1031 = vunpack.c.l.b16 %v681
      %v1032 = vunpack.c.h.b16 %v681
      %v1033 = vunpack.c.l.b16 %v682
      %v1034 = vunpack.c.h.b16 %v682
      %v1035 = vunpack.c.l.b16 %v683
      %v1036 = vunpack.c.h.b16 %v683
      %v1037 = vunpack.c.l.b16 %v684
      %v1038 = vunpack.c.h.b16 %v684
      %v1039 = vunpack.c.l.b16 %v685
      %v1040 = vunpack.c.h.b16 %v685
      %v1041 = vunpack.c.l.b16 %v686
      %v1042 = vunpack.c.h.b16 %v686
      %v1043 = vunpack.c.l.b16 %v687
      %v1044 = vunpack.c.h.b16 %v687
      %v1045 = vunpack.c.l.b16 %v688
      %v1046 = vunpack.c.h.b16 %v688
      %v1047 = vunpack.c.l.b16 %v689
      %v1048 = vunpack.c.h.b16 %v689
      %v1049 = vunpack.c.l.b16 %v690
      %v1050 = vunpack.c.h.b16 %v690
      %v1051 = vunpack.c.l.b16 %v691
      %v1052 = vunpack.c.h.b16 %v691
      %v1053 = vunpack.c.l.b16 %v692
      %v1054 = vunpack.c.h.b16 %v692
      %v1055 = vunpack.c.l.b16 %v693
      %v1056 = vunpack.c.h.b16 %v693
      %v1057 = vunpack.c.l.b16 %v694
      %v1058 = vunpack.c.h.b16 %v694
      %v1059 = vunpack.c.l.b16 %v695
      %v1060 = vunpack.c.h.b16 %v695
      %v1061 = vunpack.c.l.b16 %v696
      %v1062 = vunpack.c.h.b16 %v696
      %v1063 = vunpack.c.l.b16 %v697
      %v1064 = vunpack.c.h.b16 %v697
      %v1065 = vunpack.c.l.b16 %v698
      %v1066 = vunpack.c.h.b16 %v698
      %v1067 = vunpack.c.l.b16 %v699
      %v1068 = vunpack.c.h.b16 %v699
      %v1069 = vunpack.c.l.b16 %v700
      %v1070 = vunpack.c.h.b16 %v700
      %v1071 = vunpack.c.l.b16 %v701
      %v1072 = vunpack.c.h.b16 %v701
      %v1073 = vunpack.c.l.b16 %v702
      %v1074 = vunpack.c.h.b16 %v702
      %v1075 = vunpack.c.l.b16 %v703
      %v1076 = vunpack.c.h.b16 %v703
      %v1077 = vunpack.c.l.b16 %v704
      %v1078 = vunpack.c.h.b16 %v704
      %v1079 = vunpack.c.l.b16 %v705
      %v1080 = vunpack.c.h.b16 %v705
      %v1081 = vunpack.c.l.b16 %v706
      %v1082 = vunpack.c.h.b16 %v706
      %v1083 = vunpack.c.l.b16 %v707
      %v1084 = vunpack.c.h.b16 %v707
      %v1085 = vunpack.c.l.b16 %v708
      %v1086 = vunpack.c.h.b16 %v708
      %v1087 = vunpack.c.l.b16 %v709
      %v1088 = vunpack.c.h.b16 %v709
      %v1089 = vunpack.c.l.b16 %v710
      %v1090 = vunpack.c.h.b16 %v710
      %v1091 = vunpack.c.l.b16 %v711
      %v1092 = vunpack.c.h.b16 %v711
      %v1093 = vunpack.c.l.b16 %v712
      %v1094 = vunpack.c.h.b16 %v712
      %v1095 = vunpack.c.l.b16 %v713
      %v1096 = vunpack.c.h.b16 %v713
      %v1097 = vunpack.c.l.b16 %v714
      %v1098 = vunpack.c.h.b16 %v714
      %v1099 = vunpack.c.l.b16 %v715
      %v1100 = vunpack.c.h.b16 %v715
      %v1101 = vunpack.c.l.b16 %v716
      %v1102 = vunpack.c.h.b16 %v716
      %v1103 = vunpack.c.l.b16 %v717
      %v1104 = vunpack.c.h.b16 %v717
      %v1105 = vunpack.c.l.b16 %v718
      %v1106 = vunpack.c.h.b16 %v718
      %v1107 = vunpack.c.l.b16 %v719
      %v1108 = vunpack.c.h.b16 %v719
      %v1109 = vunpack.c.l.b16 %v720
      %v1110 = vunpack.c.h.b16 %v720
      %v1111 = vunpack.c.l.b16 %v721
      %v1112 = vunpack.c.h.b16 %v721
      %v1113 = vunpack.c.l.b16 %v722
      %v1114 = vunpack.c.h.b16 %v722
      %v1115 = vunpack.c.l.b16 %v723
      %v1116 = vunpack.c.h.b16 %v723
      %v1117 = vunpack.c.l.b16 %v724
      %v1118 = vunpack.c.h.b16 %v724
      %v1119 = vunpack.c.l.b16 %v725
      %v1120 = vunpack.c.h.b16 %v725
      %v1121 = vunpack.c.l.b16 %v726
      %v1122 = vunpack.c.h.b16 %v726
      %v1123 = vunpack.c.l.b16 %v727
      %v1124 = vunpack.c.h.b16 %v727
      %v1125 = vunpack.c.l.b16 %v728
      %v1126 = vunpack.c.h.b16 %v728
      %v1127 = vunpack.c.l.b16 %v729
      %v1128 = vunpack.c.h.b16 %v729
      %v1129 = vunpack.c.l.b16 %v730
      %v1130 = vunpack.c.h.b16 %v730
      %v1131 = vunpack.c.l.b16 %v731
      %v1132 = vunpack.c.h.b16 %v731
      %v1133 = vunpack.c.l.b16 %v732
      %v1134 = vunpack.c.h.b16 %v732
      %v1135 = vunpack.c.l.b16 %v733
      %v1136 = vunpack.c.h.b16 %v733
      %v1137 = vunpack.c.l.b16 %v734
      %v1138 = vunpack.c.h.b16 %v734
      %v1139 = vunpack.c.l.b16 %v735
      %v1140 = vunpack.c.h.b16 %v735
      %v1141 = vunpack.c.l.b16 %v736
      %v1142 = vunpack.c.h.b16 %v736
      %v1143 = vpack.c.b16 %v891, %v887
      %v1144 = vpack.c.b16 %v892, %v888
      %v1145 = vpack.c.b16 %v893, %v889
      %v1146 = vpack.c.b16 %v894, %v890
      %v1147 = vpack.c.b16 %v899, %v895
      %v1148 = vpack.c.b16 %v900, %v896
      %v1149 = vpack.c.b16 %v901, %v897
      %v1150 = vpack.c.b16 %v902, %v898
      %v1151 = vpack.c.b16 %v907, %v903
      %v1152 = vpack.c.b16 %v908, %v904
      %v1153 = vpack.c.b16 %v909, %v905
      %v1154 = vpack.c.b16 %v910, %v906
      %v1155 = vpack.c.b16 %v915, %v911
      %v1156 = vpack.c.b16 %v916, %v912
      %v1157 = vpack.c.b16 %v917, %v913
      %v1158 = vpack.c.b16 %v918, %v914
      %v1159 = vpack.c.b16 %v923, %v919
      %v1160 = vpack.c.b16 %v924, %v920
      %v1161 = vpack.c.b16 %v925, %v921
      %v1162 = vpack.c.b16 %v926, %v922
      %v1163 = vpack.c.b16 %v931, %v927
      %v1164 = vpack.c.b16 %v932, %v928
      %v1165 = vpack.c.b16 %v933, %v929
      %v1166 = vpack.c.b16 %v934, %v930
      %v1167 = vpack.c.b16 %v939, %v935
      %v1168 = vpack.c.b16 %v940, %v936
      %v1169 = vpack.c.b16 %v941, %v937
      %v1170 = vpack.c.b16 %v942, %v938
      %v1171 = vpack.c.b16 %v947, %v943
      %v1172 = vpack.c.b16 %v948, %v944
      %v1173 = vpack.c.b16 %v949, %v945
      %v1174 = vpack.c.b16 %v950, %v946
      %v1175 = vpack.c.b16 %v955, %v951
      %v1176 = vpack.c.b16 %v956, %v952
      %v1177 = vpack.c.b16 %v957, %v953
      %v1178 = vpack.c.b16 %v958, %v954
      %v1179 = vpack.c.b16 %v963, %v959
      %v1180 = vpack.c.b16 %v964, %v960
      %v1181 = vpack.c.b16 %v965, %v961
      %v1182 = vpack.c.b16 %v966, %v962
      %v1183 = vpack.c.b16 %v971, %v967
      %v1184 = vpack.c.b16 %v972, %v968
      %v1185 = vpack.c.b16 %v973, %v969
      %v1186 = vpack.c.b16 %v974, %v970
      %v1187 = vpack.c.b16 %v979, %v975
      %v1188 = vpack.c.b16 %v980, %v976
      %v1189 = vpack.c.b16 %v981, %v977
      %v1190 = vpack.c.b16 %v982, %v978
      %v1191 = vpack.c.b16 %v987, %v983
      %v1192 = vpack.c.b16 %v988, %v984
      %v1193 = vpack.c.b16 %v989, %v985
      %v1194 = vpack.c.b16 %v990, %v986
      %v1195 = vpack.c.b16 %v995, %v991
      %v1196 = vpack.c.b16 %v996, %v992
      %v1197 = vpack.c.b16 %v997, %v993
      %v1198 = vpack.c.b16 %v998, %v994
      %v1199 = vpack.c.b16 %v1003, %v999
      %v1200 = vpack.c.b16 %v1004, %v1000
      %v1201 = vpack.c.b16 %v1005, %v1001
      %v1202 = vpack.c.b16 %v1006, %v1002
      %v1203 = vpack.c.b16 %v1011, %v1007
      %v1204 = vpack.c.b16 %v1012, %v1008
      %v1205 = vpack.c.b16 %v1013, %v1009
      %v1206 = vpack.c.b16 %v1014, %v1010
      %v1207 = vpack.c.b16 %v1019, %v1015
      %v1208 = vpack.c.b16 %v1020, %v1016
      %v1209 = vpack.c.b16 %v1021, %v1017
      %v1210 = vpack.c.b16 %v1022, %v1018
      %v1211 = vpack.c.b16 %v1027, %v1023
      %v1212 = vpack.c.b16 %v1028, %v1024
      %v1213 = vpack.c.b16 %v1029, %v1025
      %v1214 = vpack.c.b16 %v1030, %v1026
      %v1215 = vpack.c.b16 %v1035, %v1031
      %v1216 = vpack.c.b16 %v1036, %v1032
      %v1217 = vpack.c.b16 %v1037, %v1033
      %v1218 = vpack.c.b16 %v1038, %v1034
      %v1219 = vpack.c.b16 %v1043, %v1039
      %v1220 = vpack.c.b16 %v1044, %v1040
      %v1221 = vpack.c.b16 %v1045, %v1041
      %v1222 = vpack.c.b16 %v1046, %v1042
      %v1223 = vpack.c.b16 %v1051, %v1047
      %v1224 = vpack.c.b16 %v1052, %v1048
      %v1225 = vpack.c.b16 %v1053, %v1049
      %v1226 = vpack.c.b16 %v1054, %v1050
      %v1227 = vpack.c.b16 %v1059, %v1055
      %v1228 = vpack.c.b16 %v1060, %v1056
      %v1229 = vpack.c.b16 %v1061, %v1057
      %v1230 = vpack.c.b16 %v1062, %v1058
      %v1231 = vpack.c.b16 %v1067, %v1063
      %v1232 = vpack.c.b16 %v1068, %v1064
      %v1233 = vpack.c.b16 %v1069, %v1065
      %v1234 = vpack.c.b16 %v1070, %v1066
      %v1235 = vpack.c.b16 %v1075, %v1071
      %v1236 = vpack.c.b16 %v1076, %v1072
      %v1237 = vpack.c.b16 %v1077, %v1073
      %v1238 = vpack.c.b16 %v1078, %v1074
      %v1239 = vpack.c.b16 %v1083, %v1079
      %v1240 = vpack.c.b16 %v1084, %v1080
      %v1241 = vpack.c.b16 %v1085, %v1081
      %v1242 = vpack.c.b16 %v1086, %v1082
      %v1243 = vpack.c.b16 %v1091, %v1087
      %v1244 = vpack.c.b16 %v1092, %v1088
      %v1245 = vpack.c.b16 %v1093, %v1089
      %v1246 = vpack.c.b16 %v1094, %v1090
      %v1247 = vpack.c.b16 %v1099, %v1095
      %v1248 = vpack.c.b16 %v1100, %v1096
      %v1249 = vpack.c.b16 %v1101, %v1097
      %v1250 = vpack.c.b16 %v1102, %v1098
      %v1251 = vpack.c.b16 %v1107, %v1103
      %v1252 = vpack.c.b16 %v1108, %v1104
      %v1253 = vpack.c.b16 %v1109, %v1105
      %v1254 = vpack.c.b16 %v1110, %v1106
      %v1255 = vpack.c.b16 %v1115, %v1111
      %v1256 = vpack.c.b16 %v1116, %v1112
      %v1257 = vpack.c.b16 %v1117, %v1113
      %v1258 = vpack.c.b16 %v1118, %v1114
      %v1259 = vpack.c.b16 %v1123, %v1119
      %v1260 = vpack.c.b16 %v1124, %v1120
      %v1261 = vpack.c.b16 %v1125, %v1121
      %v1262 = vpack.c.b16 %v1126, %v1122
      %v1263 = vpack.c.b16 %v1131, %v1127
      %v1264 = vpack.c.b16 %v1132, %v1128
      %v1265 = vpack.c.b16 %v1133, %v1129
      %v1266 = vpack.c.b16 %v1134, %v1130
      %v1267 = vpack.c.b16 %v1139, %v1135
      %v1268 = vpack.c.b16 %v1140, %v1136
      %v1269 = vpack.c.b16 %v1141, %v1137
      %v1270 = vpack.c.b16 %v1142, %v1138
      %1399 = vmatprep.subr.bf16.mxu0 %v1144
      %1400 = vmatpush1.bf16.msra.mxu0 %v1143
      %1401 = vmatprep.subr.bf16.mxu0 %v1148
      %1402 = vmatpush1.bf16.msra.mxu0 %v1147
      %1403 = vmatprep.subr.bf16.mxu0 %v1152
      %1404 = vmatpush1.bf16.msra.mxu0 %v1151
      %1405 = vmatprep.subr.bf16.mxu0 %v1156
      %1406 = vmatpush1.bf16.msra.mxu0 %v1155
      %1407 = vmatprep.subr.bf16.mxu0 %v1160
      %1408 = vmatpush1.bf16.msra.mxu0 %v1159
      %1409 = vmatprep.subr.bf16.mxu0 %v1164
      %1410 = vmatpush1.bf16.msra.mxu0 %v1163
      %1411 = vmatprep.subr.bf16.mxu0 %v1168
      %1412 = vmatpush1.bf16.msra.mxu0 %v1167
      %1413 = vmatprep.subr.bf16.mxu0 %v1172
      %1414 = vmatpush1.bf16.msra.mxu0 %v1171
      %1415 = vmatprep.subr.bf16.mxu0 %v1176
      %1416 = vmatpush1.bf16.msra.mxu0 %v1175
      %1417 = vmatprep.subr.bf16.mxu0 %v1180
      %1418 = vmatpush1.bf16.msra.mxu0 %v1179
      %1419 = vmatprep.subr.bf16.mxu0 %v1184
      %1420 = vmatpush1.bf16.msra.mxu0 %v1183
      %1421 = vmatprep.subr.bf16.mxu0 %v1188
      %1422 = vmatpush1.bf16.msra.mxu0 %v1187
      %1423 = vmatprep.subr.bf16.mxu0 %v1192
      %1424 = vmatpush1.bf16.msra.mxu0 %v1191
      %1425 = vmatprep.subr.bf16.mxu0 %v1196
      %1426 = vmatpush1.bf16.msra.mxu0 %v1195
      %1427 = vmatprep.subr.bf16.mxu0 %v1200
      %1428 = vmatpush1.bf16.msra.mxu0 %v1199
      %1429 = vmatprep.subr.bf16.mxu0 %v1204
      %1430 = vmatpush1.bf16.msra.mxu0 %v1203
      %1431 = vmatprep.mubr.bf16.mxu0 %v602
      %1432 = vmatmul.mubr.bf16.gmra.mrb[0].mxu0 %v601
      %v1433 = vpop.f32.mrb[0].mxu0
      %v1434 = vadd.f32 %v742, %v1433
      %v1435 = vpop.f32.mrb[0].mxu0
      %v1436 = vadd.f32 %v746, %v1435
      %v1437 = vpop.f32.mrb[0].mxu0
      %v1438 = vadd.f32 %v742, %v1437
      %v1439 = vpop.f32.mrb[0].mxu0
      %v1440 = vadd.f32 %v746, %v1439
      %1441 = vmatprep.mubr.bf16.mxu0 %v606
      %1442 = vmatmul.mubr.bf16.gmra.mrb[0].mxu0 %v605
      %v1443 = vpop.f32.mrb[0].mxu0
      %v1444 = vadd.f32 %v742, %v1443
      %v1445 = vpop.f32.mrb[0].mxu0
      %v1446 = vadd.f32 %v746, %v1445
      %v1447 = vpop.f32.mrb[0].mxu0
      %v1448 = vadd.f32 %v742, %v1447
      %v1449 = vpop.f32.mrb[0].mxu0
      %v1450 = vadd.f32 %v746, %v1449
      %1451 = vdwg.mxu0
      %1452 = vmatprep.subr.bf16.mxu0 %v1208
      %1453 = vmatpush1.bf16.msra.mxu0 %v1207
      %1454 = vmatprep.subr.bf16.mxu0 %v1212
      %1455 = vmatpush1.bf16.msra.mxu0 %v1211
      %1456 = vmatprep.subr.bf16.mxu0 %v1216
      %1457 = vmatpush1.bf16.msra.mxu0 %v1215
      %1458 = vmatprep.subr.bf16.mxu0 %v1220
      %1459 = vmatpush1.bf16.msra.mxu0 %v1219
      %1460 = vmatprep.subr.bf16.mxu0 %v1224
      %1461 = vmatpush1.bf16.msra.mxu0 %v1223
      %1462 = vmatprep.subr.bf16.mxu0 %v1228
      %1463 = vmatpush1.bf16.msra.mxu0 %v1227
      %1464 = vmatprep.subr.bf16.mxu0 %v1232
      %1465 = vmatpush1.bf16.msra.mxu0 %v1231
      %1466 = vmatprep.subr.bf16.mxu0 %v1236
      %1467 = vmatpush1.bf16.msra.mxu0 %v1235
      %1468 = vmatprep.subr.bf16.mxu0 %v1240
      %1469 = vmatpush1.bf16.msra.mxu0 %v1239
      %1470 = vmatprep.subr.bf16.mxu0 %v1244
      %1471 = vmatpush1.bf16.msra.mxu0 %v1243
      %1472 = vmatprep.subr.bf16.mxu0 %v1248
      %1473 = vmatpush1.bf16.msra.mxu0 %v1247
      %1474 = vmatprep.subr.bf16.mxu0 %v1252
      %1475 = vmatpush1.bf16.msra.mxu0 %v1251
      %1476 = vmatprep.subr.bf16.mxu0 %v1256
      %1477 = vmatpush1.bf16.msra.mxu0 %v1255
      %1478 = vmatprep.subr.bf16.mxu0 %v1260
      %1479 = vmatpush1.bf16.msra.mxu0 %v1259
      %1480 = vmatprep.subr.bf16.mxu0 %v1264
      %1481 = vmatpush1.bf16.msra.mxu0 %v1263
      %1482 = vmatprep.subr.bf16.mxu0 %v1268
      %1483 = vmatpush1.bf16.msra.mxu0 %v1267
      %1484 = vmatprep.mubr.bf16.mxu0 %v604
      %1485 = vmatmul.mubr.bf16.gmra.mrb[0].mxu0 %v603
      %v1486 = vpop.f32.mrb[0].mxu0
      %v1487 = vadd.f32 %v1434, %v1486
      %v1488 = vpop.f32.mrb[0].mxu0
      %v1489 = vadd.f32 %v1436, %v1488
      %v1490 = vpop.f32.mrb[0].mxu0
      %v1491 = vadd.f32 %v1438, %v1490
      %v1492 = vpop.f32.mrb[0].mxu0
      %v1493 = vadd.f32 %v1440, %v1492
      %1494 = vmatprep.mubr.bf16.mxu0 %v608
      %1495 = vmatmul.mubr.bf16.gmra.mrb[0].mxu0 %v607
      %v1496 = vpop.f32.mrb[0].mxu0
      %v1497 = vadd.f32 %v1444, %v1496
      %v1498 = vpop.f32.mrb[0].mxu0
      %v1499 = vadd.f32 %v1446, %v1498
      %v1500 = vpop.f32.mrb[0].mxu0
      %v1501 = vadd.f32 %v1448, %v1500
      %v1502 = vpop.f32.mrb[0].mxu0
      %v1503 = vadd.f32 %v1450, %v1502
      %1504 = vdwg.mxu0
      %1505 = vmatprep.subr.bf16.mxu0 %v1146
      %1506 = vmatpush1.bf16.msra.mxu0 %v1145
      %1507 = vmatprep.subr.bf16.mxu0 %v1150
      %1508 = vmatpush1.bf16.msra.mxu0 %v1149
      %1509 = vmatprep.subr.bf16.mxu0 %v1154
      %1510 = vmatpush1.bf16.msra.mxu0 %v1153
      %1511 = vmatprep.subr.bf16.mxu0 %v1158
      %1512 = vmatpush1.bf16.msra.mxu0 %v1157
      %1513 = vmatprep.subr.bf16.mxu0 %v1162
      %1514 = vmatpush1.bf16.msra.mxu0 %v1161
      %1515 = vmatprep.subr.bf16.mxu0 %v1166
      %1516 = vmatpush1.bf16.msra.mxu0 %v1165
      %1517 = vmatprep.subr.bf16.mxu0 %v1170
      %1518 = vmatpush1.bf16.msra.mxu0 %v1169
      %1519 = vmatprep.subr.bf16.mxu0 %v1174
      %1520 = vmatpush1.bf16.msra.mxu0 %v1173
      %1521 = vmatprep.subr.bf16.mxu0 %v1178
      %1522 = vmatpush1.bf16.msra.mxu0 %v1177
      %1523 = vmatprep.subr.bf16.mxu0 %v1182
      %1524 = vmatpush1.bf16.msra.mxu0 %v1181
      %1525 = vmatprep.subr.bf16.mxu0 %v1186
      %1526 = vmatpush1.bf16.msra.mxu0 %v1185
      %1527 = vmatprep.subr.bf16.mxu0 %v1190
      %1528 = vmatpush1.bf16.msra.mxu0 %v1189
      %1529 = vmatprep.subr.bf16.mxu0 %v1194
      %1530 = vmatpush1.bf16.msra.mxu0 %v1193
      %1531 = vmatprep.subr.bf16.mxu0 %v1198
      %1532 = vmatpush1.bf16.msra.mxu0 %v1197
      %1533 = vmatprep.subr.bf16.mxu0 %v1202
      %1534 = vmatpush1.bf16.msra.mxu0 %v1201
      %1535 = vmatprep.subr.bf16.mxu0 %v1206
      %1536 = vmatpush1.bf16.msra.mxu0 %v1205
      %1537 = vmatprep.mubr.bf16.mxu0 %v602
      %1538 = vmatmul.mubr.bf16.gmra.mrb[0].mxu0 %v601
      %v1539 = vpop.f32.mrb[0].mxu0
      %v1540 = vadd.f32 %v750, %v1539
      %v1541 = vpop.f32.mrb[0].mxu0
      %v1542 = vadd.f32 %v754, %v1541
      %v1543 = vpop.f32.mrb[0].mxu0
      %v1544 = vadd.f32 %v750, %v1543
      %v1545 = vpop.f32.mrb[0].mxu0
      %v1546 = vadd.f32 %v754, %v1545
      %1547 = vmatprep.mubr.bf16.mxu0 %v606
      %1548 = vmatmul.mubr.bf16.gmra.mrb[0].mxu0 %v605
      %v1549 = vpop.f32.mrb[0].mxu0
      %v1550 = vadd.f32 %v750, %v1549
      %v1551 = vpop.f32.mrb[0].mxu0
      %v1552 = vadd.f32 %v754, %v1551
      %v1553 = vpop.f32.mrb[0].mxu0
      %v1554 = vadd.f32 %v750, %v1553
      %v1555 = vpop.f32.mrb[0].mxu0
      %v1556 = vadd.f32 %v754, %v1555
      %1557 = vdwg.mxu0
      %1558 = vmatprep.subr.bf16.mxu0 %v1210
      %1559 = vmatpush1.bf16.msra.mxu0 %v1209
      %1560 = vmatprep.subr.bf16.mxu0 %v1214
      %1561 = vmatpush1.bf16.msra.mxu0 %v1213
      %1562 = vmatprep.subr.bf16.mxu0 %v1218
      %1563 = vmatpush1.bf16.msra.mxu0 %v1217
      %1564 = vmatprep.subr.bf16.mxu0 %v1222
      %1565 = vmatpush1.bf16.msra.mxu0 %v1221
      %1566 = vmatprep.subr.bf16.mxu0 %v1226
      %1567 = vmatpush1.bf16.msra.mxu0 %v1225
      %1568 = vmatprep.subr.bf16.mxu0 %v1230
      %1569 = vmatpush1.bf16.msra.mxu0 %v1229
      %1570 = vmatprep.subr.bf16.mxu0 %v1234
      %1571 = vmatpush1.bf16.msra.mxu0 %v1233
      %1572 = vmatprep.subr.bf16.mxu0 %v1238
      %1573 = vmatpush1.bf16.msra.mxu0 %v1237
      %1574 = vmatprep.subr.bf16.mxu0 %v1242
      %1575 = vmatpush1.bf16.msra.mxu0 %v1241
      %1576 = vmatprep.subr.bf16.mxu0 %v1246
      %1577 = vmatpush1.bf16.msra.mxu0 %v1245
      %1578 = vmatprep.subr.bf16.mxu0 %v1250
      %1579 = vmatpush1.bf16.msra.mxu0 %v1249
      %1580 = vmatprep.subr.bf16.mxu0 %v1254
      %1581 = vmatpush1.bf16.msra.mxu0 %v1253
      %1582 = vmatprep.subr.bf16.mxu0 %v1258
      %1583 = vmatpush1.bf16.msra.mxu0 %v1257
      %1584 = vmatprep.subr.bf16.mxu0 %v1262
      %1585 = vmatpush1.bf16.msra.mxu0 %v1261
      %1586 = vmatprep.subr.bf16.mxu0 %v1266
      %1587 = vmatpush1.bf16.msra.mxu0 %v1265
      %1588 = vmatprep.subr.bf16.mxu0 %v1270
      %1589 = vmatpush1.bf16.msra.mxu0 %v1269
      %1590 = vmatprep.mubr.bf16.mxu0 %v604
      %1591 = vmatmul.mubr.bf16.gmra.mrb[0].mxu0 %v603
      %v1592 = vpop.f32.mrb[0].mxu0
      %v1593 = vadd.f32 %v1540, %v1592
      %v1594 = vpop.f32.mrb[0].mxu0
      %v1595 = vadd.f32 %v1542, %v1594
      %v1596 = vpop.f32.mrb[0].mxu0
      %v1597 = vadd.f32 %v1544, %v1596
      %v1598 = vpop.f32.mrb[0].mxu0
      %v1599 = vadd.f32 %v1546, %v1598
      %1600 = vmatprep.mubr.bf16.mxu0 %v608
      %1601 = vmatmul.mubr.bf16.gmra.mrb[0].mxu0 %v607
      %v1602 = vpop.f32.mrb[0].mxu0
      %v1603 = vadd.f32 %v1550, %v1602
      %v1604 = vpop.f32.mrb[0].mxu0
      %v1605 = vadd.f32 %v1552, %v1604
      %v1606 = vpop.f32.mrb[0].mxu0
      %v1607 = vadd.f32 %v1554, %v1606
      %v1608 = vpop.f32.mrb[0].mxu0
      %v1609 = vadd.f32 %v1556, %v1608
      %1610 = vdwg.mxu0
      %v1611 = vpack.c.bf16 %v1491, %v1487
      %v1612 = vpack.c.bf16 %v1493, %v1489
      %v1613 = vpack.c.bf16 %v1597, %v1593
      %v1614 = vpack.c.bf16 %v1599, %v1595
      %v1615 = vpack.c.bf16 %v1501, %v1497
      %v1616 = vpack.c.bf16 %v1503, %v1499
      %v1617 = vpack.c.bf16 %v1607, %v1603
      %v1618 = vpack.c.bf16 %v1609, %v1605
      %v1627 = vunpack.c.l.b16 %v1611
      %v1628 = vunpack.c.l.b16 %v1612
      %v1629 = vunpack.c.l.b16 %v1613
      %v1630 = vunpack.c.l.b16 %v1614
      %v1631 = vunpack.c.h.b16 %v1611
      %v1632 = vunpack.c.h.b16 %v1612
      %v1633 = vunpack.c.h.b16 %v1613
      %v1634 = vunpack.c.h.b16 %v1614
      %v1635 = vunpack.c.l.b16 %v1615
      %v1636 = vunpack.c.l.b16 %v1616
      %v1637 = vunpack.c.l.b16 %v1617
      %v1638 = vunpack.c.l.b16 %v1618
      %v1639 = vunpack.c.h.b16 %v1615
      %v1640 = vunpack.c.h.b16 %v1616
      %v1641 = vunpack.c.h.b16 %v1617
      %v1642 = vunpack.c.h.b16 %v1618
      %v1643 = vpack.c.b16 %v1628, %v1627
      %v1644 = vpack.c.b16 %v1630, %v1629
      %v1645 = vpack.c.b16 %v1632, %v1631
      %v1646 = vpack.c.b16 %v1634, %v1633
      %v1647 = vpack.c.b16 %v1636, %v1635
      %v1648 = vpack.c.b16 %v1638, %v1637
      %v1649 = vpack.c.b16 %v1640, %v1639
      %v1650 = vpack.c.b16 %v1642, %v1641
      %1659 = vst [vmem:[%s325] sm:$0xff] %v1643
      %1660 = vst [vmem:[%s325 + $0x8] sm:$0xff] %v1644
      %1661 = vst [vmem:[%s325 + $0x10] sm:$0xff] %v1645
      %1662 = vst [vmem:[%s325 + $0x18] sm:$0xff] %v1646
      %1663 = vst [vmem:[%s325 + $0x20] sm:$0xff] %v1647
      %1664 = vst [vmem:[%s325 + $0x28] sm:$0xff] %v1648
      %1665 = vst [vmem:[%s325 + $0x30] sm:$0xff] %v1649
      %1666 = vst [vmem:[%s325 + $0x38] sm:$0xff] %v1650
      %v1667 = vadd.f32 %v1487, %v1491
      %v1668 = vadd.f32 %v1667, %v1497
      %v1669 = vadd.f32 %v1668, %v1501
      %v1670 = vrot.slane %v1669, 4
      %v1671 = vadd.f32 %v1669, %v1670
      %v1672 = vrot.slane %v1671, 2
      %v1673 = vadd.f32 %v1671, %v1672
      %v1674 = vrot.slane %v1673, 1
      %v1675 = vadd.f32 %v1673, %v1674
      %v1676 = vadd.f32 %v1489, %v1493
      %v1677 = vadd.f32 %v1676, %v1499
      %v1678 = vadd.f32 %v1677, %v1503
      %v1679 = vrot.slane %v1678, 4
      %v1680 = vadd.f32 %v1678, %v1679
      %v1681 = vrot.slane %v1680, 2
      %v1682 = vadd.f32 %v1680, %v1681
      %v1683 = vrot.slane %v1682, 1
      %v1684 = vadd.f32 %v1682, %v1683
      %v1685 = vadd.f32 %v1593, %v1597
      %v1686 = vadd.f32 %v1685, %v1603
      %v1687 = vadd.f32 %v1686, %v1607
      %v1688 = vrot.slane %v1687, 4
      %v1689 = vadd.f32 %v1687, %v1688
      %v1690 = vrot.slane %v1689, 2
      %v1691 = vadd.f32 %v1689, %v1690
      %v1692 = vrot.slane %v1691, 1
      %v1693 = vadd.f32 %v1691, %v1692
      %v1694 = vadd.f32 %v1595, %v1599
      %v1695 = vadd.f32 %v1694, %v1605
      %v1696 = vadd.f32 %v1695, %v1609
      %v1697 = vrot.slane %v1696, 4
      %v1698 = vadd.f32 %v1696, %v1697
      %v1699 = vrot.slane %v1698, 2
      %v1700 = vadd.f32 %v1698, %v1699
      %v1701 = vrot.slane %v1700, 1
      %v1702 = vadd.f32 %v1700, %v1701
      %v1707 = vcombine.low %v1675, %v1684
      %v1708 = vcombine.low %v1693, %v1702
      %v1710 = vunpack.c.l.s4 1966171168
      %v1711 = vunpack.c.0.s8 %v1710
      %v1712 = vlaneseq
      %v1713 = vshrl.u32 %v1712, 7
      %v1714 = vsub.s32 %v1711, %v1713
      %v1715 = vrot.slane %v1707, %v1714
      %v1717 = vunpack.c.l.s4 1966171168
      %v1718 = vunpack.c.0.s8 %v1717
      %v1719 = vlaneseq
      %v1720 = vshrl.u32 %v1719, 7
      %v1721 = vsub.s32 %v1718, %v1720
      %v1722 = vrot.slane %v1708, %v1721
      %v1723 = vcombine.low %v1715, %v1722
      %v1725 = vunpack.c.l.s4 1966171168
      %v1726 = vunpack.c.0.s8 %v1725
      %v1727 = vlaneseq
      %v1728 = vshrl.u32 %v1727, 7
      %v1729 = vsub.s32 %v1726, %v1728
      %v1730 = vrot.slane %v1723, %v1729
      %v1732 = vlaneseq
      %vm1733 = vcmp.ge.s32.totalorder %v1732, 0
      %vm1734 = vcmp.lt.s32.totalorder %v1732, 512
      %vm1735 = vmand %vm1733, %vm1734
      %1736 = vst.msk [vmem:[%s329] sm:$0xf] %vm1735, %v1730
      %v1737 = vmul.f32 %v1487, %v1487
      %v1738 = vmul.f32 %v1489, %v1489
      %v1739 = vmul.f32 %v1593, %v1593
      %v1740 = vmul.f32 %v1595, %v1595
      %v1741 = vmul.f32 %v1491, %v1491
      %v1742 = vmul.f32 %v1493, %v1493
      %v1743 = vmul.f32 %v1597, %v1597
      %v1744 = vmul.f32 %v1599, %v1599
      %v1745 = vmul.f32 %v1497, %v1497
      %v1746 = vmul.f32 %v1499, %v1499
      %v1747 = vmul.f32 %v1603, %v1603
      %v1748 = vmul.f32 %v1605, %v1605
      %v1749 = vmul.f32 %v1501, %v1501
      %v1750 = vmul.f32 %v1503, %v1503
      %v1751 = vmul.f32 %v1607, %v1607
      %v1752 = vmul.f32 %v1609, %v1609
      %v1753 = vadd.f32 %v1737, %v1741
      %v1754 = vadd.f32 %v1753, %v1745
      %v1755 = vadd.f32 %v1754, %v1749
      %v1756 = vrot.slane %v1755, 4
      %v1757 = vadd.f32 %v1755, %v1756
      %v1758 = vrot.slane %v1757, 2
      %v1759 = vadd.f32 %v1757, %v1758
      %v1760 = vrot.slane %v1759, 1
      %v1761 = vadd.f32 %v1759, %v1760
      %v1762 = vadd.f32 %v1738, %v1742
      %v1763 = vadd.f32 %v1762, %v1746
      %v1764 = vadd.f32 %v1763, %v1750
      %v1765 = vrot.slane %v1764, 4
      %v1766 = vadd.f32 %v1764, %v1765
      %v1767 = vrot.slane %v1766, 2
      %v1768 = vadd.f32 %v1766, %v1767
      %v1769 = vrot.slane %v1768, 1
      %v1770 = vadd.f32 %v1768, %v1769
      %v1771 = vadd.f32 %v1739, %v1743
      %v1772 = vadd.f32 %v1771, %v1747
      %v1773 = vadd.f32 %v1772, %v1751
      %v1774 = vrot.slane %v1773, 4
      %v1775 = vadd.f32 %v1773, %v1774
      %v1776 = vrot.slane %v1775, 2
      %v1777 = vadd.f32 %v1775, %v1776
      %v1778 = vrot.slane %v1777, 1
      %v1779 = vadd.f32 %v1777, %v1778
      %v1780 = vadd.f32 %v1740, %v1744
      %v1781 = vadd.f32 %v1780, %v1748
      %v1782 = vadd.f32 %v1781, %v1752
      %v1783 = vrot.slane %v1782, 4
      %v1784 = vadd.f32 %v1782, %v1783
      %v1785 = vrot.slane %v1784, 2
      %v1786 = vadd.f32 %v1784, %v1785
      %v1787 = vrot.slane %v1786, 1
      %v1788 = vadd.f32 %v1786, %v1787
      %v1793 = vcombine.low %v1761, %v1770
      %v1794 = vcombine.low %v1779, %v1788
      %v1796 = vunpack.c.l.s4 1966171168
      %v1797 = vunpack.c.0.s8 %v1796
      %v1798 = vlaneseq
      %v1799 = vshrl.u32 %v1798, 7
      %v1800 = vsub.s32 %v1797, %v1799
      %v1801 = vrot.slane %v1793, %v1800
      %v1803 = vunpack.c.l.s4 1966171168
      %v1804 = vunpack.c.0.s8 %v1803
      %v1805 = vlaneseq
      %v1806 = vshrl.u32 %v1805, 7
      %v1807 = vsub.s32 %v1804, %v1806
      %v1808 = vrot.slane %v1794, %v1807
      %v1809 = vcombine.low %v1801, %v1808
      %v1811 = vunpack.c.l.s4 1966171168
      %v1812 = vunpack.c.0.s8 %v1811
      %v1813 = vlaneseq
      %v1814 = vshrl.u32 %v1813, 7
      %v1815 = vsub.s32 %v1812, %v1814
      %v1816 = vrot.slane %v1809, %v1815
      %1818 = vst.msk [vmem:[%s333] sm:$0xf] %vm1735, %v1816
      %p1819 = scmp.lt.s32.totalorder %s19, 1
      %s1820 = scalar_select %p1819, %s19, 1
      %s1821 = smul.addr %s1820, 16
      %s1822 = smul.addr %s1821, 4
      %s1823 = scalar_lea.vmem %s5, %s1822
      %p1824 = scmp.lt.s32.totalorder %s19, 1
      %s1825 = scalar_select %p1824, %s19, 1
      %s1826 = smul.addr %s1825, 4
      %s1827 = scalar_lea.vmem %s6, %s1826
      %p1828 = scmp.lt.s32.totalorder %s19, 1
      %s1829 = scalar_select %p1828, %s19, 1
      %s1830 = smul.addr %s1829, 4
      %s1831 = scalar_lea.vmem %s7, %s1830
      // Predicated region
      $region41: #{local_gcn_forward.2} parent=39 // pred_check
        %p1832 = pneg %p157
      $region42: #{local_gcn_forward.2} parent=39 // pred_check_branch
        %1834 = sbr.rel (%p1832) target = $region44
      $region43: #{local_gcn_forward.2} parent=39 // pred_region
        _
      $region44: #{local_gcn_forward.2} parent=39 // pred_fallthru
        _
      // Predicated region
      $region45: #{local_gcn_forward.2} parent=39 // pred_check
        %p1835 = pneg %p183
      $region46: #{local_gcn_forward.2} parent=39 // pred_check_branch
        %1837 = sbr.rel (%p1835) target = $region48
      $region47: #{local_gcn_forward.2} parent=39 // pred_region
        _
      $region48: #{local_gcn_forward.2} parent=39 // pred_fallthru
        _
      // Predicated region
      $region49: #{local_gcn_forward.2} parent=39 // pred_check
        %p1838 = pneg %p209
      $region50: #{local_gcn_forward.2} parent=39 // pred_check_branch
        %1840 = sbr.rel (%p1838) target = $region52
      $region51: #{local_gcn_forward.2} parent=39 // pred_region
        _
      $region52: #{local_gcn_forward.2} parent=39 // pred_fallthru
        _
    $region40: #{local_gcn_forward.2} parent=5 // pred_fallthru
      _
    %p1841 = scmp.le.s32.totalorder 2, %s14
    // Predicated region
    $region53: #{local_gcn_forward.2} parent=5 // pred_check
      %p1842 = pneg %p1841
    $region54: #{local_gcn_forward.2} parent=5 // pred_check_branch
      %1844 = sbr.rel (%p1842) target = $region56
    $region55: #{local_gcn_forward.2} parent=5 // pred_region
      %s1845 = ssub.s32 %s14, 2
      // Predicated region
      $region57: #{local_gcn_forward.2} parent=55 // pred_check
        %p1846 = pneg %p163
      $region58: #{local_gcn_forward.2} parent=55 // pred_check_branch
        %1848 = sbr.rel (%p1846) target = $region60
      $region59: #{local_gcn_forward.2} parent=55 // pred_region
        %p1849 = scmp.lt.s32.totalorder %s20, 1
        %s1850 = scalar_select %p1849, %s20, 1
        %s1851 = smul.addr %s1850, 16
        %s1852 = smul.addr %s1851, 4
        %s1853 = scalar_lea.vmem %s5, %s1852
      $region60: #{local_gcn_forward.2} parent=55 // pred_fallthru
        _
      // Predicated region
      $region61: #{local_gcn_forward.2} parent=55 // pred_check
        %p1854 = pneg %p189
      $region62: #{local_gcn_forward.2} parent=55 // pred_check_branch
        %1856 = sbr.rel (%p1854) target = $region64
      $region63: #{local_gcn_forward.2} parent=55 // pred_region
        %p1857 = scmp.lt.s32.totalorder %s20, 1
        %s1858 = scalar_select %p1857, %s20, 1
        %s1859 = smul.addr %s1858, 4
        %s1860 = scalar_lea.vmem %s6, %s1859
      $region64: #{local_gcn_forward.2} parent=55 // pred_fallthru
        _
      // Predicated region
      $region65: #{local_gcn_forward.2} parent=55 // pred_check
        %p1861 = pneg %p215
      $region66: #{local_gcn_forward.2} parent=55 // pred_check_branch
        %1863 = sbr.rel (%p1861) target = $region68
      $region67: #{local_gcn_forward.2} parent=55 // pred_region
        %p1864 = scmp.lt.s32.totalorder %s20, 1
        %s1865 = scalar_select %p1864, %s20, 1
        %s1866 = smul.addr %s1865, 4
        %s1867 = scalar_lea.vmem %s7, %s1866
      $region68: #{local_gcn_forward.2} parent=55 // pred_fallthru
        _
    $region56: #{local_gcn_forward.2} parent=5 // pred_fallthru
      _
  $region6: #{local_gcn_forward.2} parent=0 // loop_footer
    %s18 = sadd.s32 1, %s14
  $region7: #{local_gcn_forward.2} parent=0 // loop_footer_branch
    %13 = sbr.rel target = $region3
  $region8: #{local_gcn_forward.2} parent=0 // loop_exit
    _

</llo_original>
